<compile_context>
chip_gen: v7x
topology: tpu7x:2x2x1
jax: 0.10.0
libtpu: 0.0.40
codegen_flags: <defaults>
</compile_context>

<pallas_src>
import jax
import jax.numpy as jnp
from jax.experimental import pallas as pl
from jax.experimental.pallas import tpu as pltpu

HID = 32
N_SLOTS = 2
N_ROUNDS = 2
N_TYPES = 2
IS_ATK = True          # Model(..., is_atk=True, vn=None)
CRIT_IN = N_TYPES + N_ROUNDS + N_TYPES + N_SLOTS + N_SLOTS + N_SLOTS + N_SLOTS  # 14

assert N_SLOTS == 2    # 2-way softmax implemented as sigmoid of the logit difference

LANE = 128             # batch tile must be a multiple of the lane width
MAX_TB = 1024          # keeps the ~10 live (HID, TB) f32 temps << 64 MiB VMEM (v7x-safe)


def _round_up(x, m):
    return (x + m - 1) // m * m


def model_kernel(prior_ref, r_ref,
                 aw1_ref, ab1_ref, aw2_ref, ab2_ref,
                 dw1_ref, db1_ref, dw2_ref, db2_ref,
                 cw1_ref, cb1_ref, cw2_ref, cb2_ref,
                 y_ref):
    f32 = jnp.float32
    prior = prior_ref[...]                    # (n_types,  TB)
    r = r_ref[...]                            # (n_rounds, TB)
    aw1 = aw1_ref[...]; ab1 = ab1_ref[...]    # (HID, 6),        (HID, 1)
    aw2 = aw2_ref[...]; ab2 = ab2_ref[...]    # (n_slots, HID),  (n_slots, 1)
    dw1 = dw1_ref[...]; db1 = db1_ref[...]    # (HID, 4),        (HID, 1)
    dw2 = dw2_ref[...]; db2 = db2_ref[...]    # (n_slots, HID),  (n_slots, 1)
    cw1 = cw1_ref[...]; cb1 = cb1_ref[...]    # (HID, CRIT_IN),  (HID, 1)
    cw2 = cw2_ref[...]; cb2 = cb2_ref[...]    # (1, HID),        (1, 1)

    def affine1(wT, bT):
        # K=2 contractions as VPU broadcast-multiply-adds (no padded MXU matmuls).
        h = bT
        for j in range(N_TYPES):
            h = h + wT[:, j:j + 1] * prior[j:j + 1, :]
        for j in range(N_ROUNDS):
            c = N_TYPES + j
            h = h + wT[:, c:c + 1] * r[j:j + 1, :]
        return h                                                       # (HID, TB)

    def head_probs(h, w2T, b2T):
        # softmax over 2 slots == sigmoid of the logit difference (1 exp + EUP reciprocal)
        logits = jnp.dot(w2T, h, preferred_element_type=f32) + b2T     # (2, TB)
        d = logits[1:2, :] - logits[0:1, :]
        p0 = pl.reciprocal(1.0 + jnp.exp(d), approx=True)              # (1, TB)
        return p0, 1.0 - p0

    # ---- dfd actor:  dfd_ob = cat(prior, r) ----
    dfd_h = jnp.maximum(affine1(dw1, db1), 0.0)                        # (HID, TB)
    dfd_p = head_probs(dfd_h, dw2, db2)

    # ---- atk actor per one-hot type:  atk_ob = cat(prior, r, onehot(t)) ----
    atk_base = affine1(aw1, ab1)
    atk_p = []
    for t in range(N_TYPES):
        col = N_TYPES + N_ROUNDS + t
        h = jnp.maximum(atk_base + aw1[:, col:col + 1], 0.0)
        atk_p.append(head_probs(h, aw2, ab2))

    # ---- critic, fused over the 8 (t, a, b) combinations ----
    # critic input layout: [prior | r | atk_tp | atk_prob | atk_ac | dfd_prob | dfd_ac]
    # Since the 2nd critic layer is linear:
    #   y = cw2 @ (sum_{t,a,b} w_{t,a,b} * ReLU(pre_{t,a,b})) + cb2 * (sum w)   (sum w == 1)
    o_prior, o_r, o_tp, o_ap, o_ac, o_dp, o_dc = 0, 2, 4, 6, 8, 10, 12
    crit_base = cb1
    for j in range(N_TYPES):
        crit_base = crit_base + cw1[:, o_prior + j:o_prior + j + 1] * prior[j:j + 1, :]
    for j in range(N_ROUNDS):
        crit_base = crit_base + cw1[:, o_r + j:o_r + j + 1] * r[j:j + 1, :]
    for j in range(N_SLOTS):
        crit_base = crit_base + cw1[:, o_dp + j:o_dp + j + 1] * dfd_p[j]

    acc = jnp.zeros_like(crit_base)                                    # (HID, TB)
    wsum = None if IS_ATK else jnp.zeros_like(dfd_p[0])
    for t in range(N_TYPES):
        ap = atk_p[t]
        base_t = crit_base + cw1[:, o_tp + t:o_tp + t + 1]             # one-hot type row
        for j in range(N_SLOTS):
            base_t = base_t + cw1[:, o_ap + j:o_ap + j + 1] * ap[j]
        mix = (1.0 / N_TYPES) if IS_ATK else prior[t:t + 1, :]
        # TODO(synk): new_prior = batch_bayes(...) is only consumed when vn is not None;
        #             with vn=None it is dead code, so it is not computed here.
        for a in range(N_SLOTS):
            wa = ap[a] * mix                                           # (1, TB)
            ac_col = cw1[:, o_ac + a:o_ac + a + 1]
            for b in range(N_SLOTS):
                col = ac_col + cw1[:, o_dc + b:o_dc + b + 1]           # hoisted one-hot rows (HID,1)
                h = jnp.maximum(base_t + col, 0.0)                     # (HID, TB)
                w = wa * dfd_p[b]                                      # (1, TB)
                acc = acc + h * w
                if not IS_ATK:
                    wsum = wsum + w
    y = jnp.dot(cw2, acc, preferred_element_type=f32)                  # (1, TB), lane-dense
    y = y + cb2 if IS_ATK else y + cb2 * wsum
    y_ref[...] = y


def make_params(key):
    """Deterministic PyTorch-style (uniform +/- 1/sqrt(fan_in)) Linear initialization."""
    ks = jax.random.split(key, 12)

    def lin(kw, kb, fan_in, fan_out):
        bound = 1.0 / float(fan_in) ** 0.5
        w = jax.random.uniform(kw, (fan_in, fan_out), jnp.float32, -bound, bound)
        b = jax.random.uniform(kb, (1, fan_out), jnp.float32, -bound, bound)
        return w, b

    aw1, ab1 = lin(ks[0], ks[1], N_TYPES + N_ROUNDS + N_TYPES, HID)   # atk_actor.affine1
    aw2, ab2 = lin(ks[2], ks[3], HID, N_SLOTS)                        # atk_actor.affine2
    dw1, db1 = lin(ks[4], ks[5], N_TYPES + N_ROUNDS, HID)             # dfd_actor.affine1
    dw2, db2 = lin(ks[6], ks[7], HID, N_SLOTS)                        # dfd_actor.affine2
    cw1, cb1 = lin(ks[8], ks[9], CRIT_IN, HID)                        # critic layer 1
    cw2, cb2 = lin(ks[10], ks[11], HID, 1)                            # critic layer 2
    return (aw1, ab1, aw2, ab2, dw1, db1, dw2, db2, cw1, cb1, cw2, cb2)


@jax.jit
def model_forward(prior, r, params):
    aw1, ab1, aw2, ab2, dw1, db1, dw2, db2, cw1, cb1, cw2, cb2 = params
    B = prior.shape[0]
    bp = _round_up(B, LANE)          # pad batch to a lane-aligned size
    tb = min(MAX_TB, bp)             # batch tile (multiple of 128, VMEM-safe on v7x)
    bp = _round_up(bp, tb)

    def pad_t(x):                    # (B, feat) -> padded, transposed (feat, bp)
        return jnp.pad(x.astype(jnp.float32), ((0, bp - B), (0, 0))).T

    prior_t = pad_t(prior)
    r_t = pad_t(r)
    # transposed weights so all per-feature columns are (HID, 1) lane-broadcasts in-kernel
    weights = (aw1.T, ab1.T, aw2.T, ab2.T,
               dw1.T, db1.T, dw2.T, db2.T,
               cw1.T, cb1.T, cw2.T, cb2.T)

    grid = (bp // tb,)
    batch_spec = lambda feat: pl.BlockSpec((feat, tb), lambda i: (0, i))
    in_specs = ([batch_spec(N_TYPES), batch_spec(N_ROUNDS)]
                + [pl.BlockSpec(w.shape, lambda i: (0, 0)) for w in weights])
    out_spec = pl.BlockSpec((1, tb), lambda i: (0, i))

    y = pl.pallas_call(
        model_kernel,
        out_shape=jax.ShapeDtypeStruct((1, bp), jnp.float32),
        grid=grid,
        in_specs=in_specs,
        out_specs=out_spec,
        compiler_params=pltpu.CompilerParams(
            dimension_semantics=("parallel",)),
    )(prior_t, r_t, *weights)
    return y[0, :B].reshape(B, 1)


def reference_forward(prior, r, params):
    """Pure-JAX transcription of the PyTorch forward (concat + one-hots), for validation."""
    aw1, ab1, aw2, ab2, dw1, db1, dw2, db2, cw1, cb1, cw2, cb2 = params

    def actor(x, w1, b1, w2, b2):
        h = jnp.maximum(x @ w1 + b1, 0.0)
        return jax.nn.softmax(h @ w2 + b2, axis=-1)

    B = prior.shape[0]
    dfd_prob = actor(jnp.concatenate([prior, r], 1), dw1, db1, dw2, db2)
    atk_probs = []
    for t in range(N_TYPES):
        tp = jnp.zeros((B, N_TYPES)).at[:, t].set(1.0)
        atk_probs.append(actor(jnp.concatenate([prior, r, tp], 1), aw1, ab1, aw2, ab2))
    y = jnp.zeros((B, 1), jnp.float32)
    for t in range(N_TYPES):
        tp = jnp.zeros((B, N_TYPES)).at[:, t].set(1.0)
        atk_prob = atk_probs[t]
        for a in range(N_SLOTS):
            ac = jnp.zeros((B, N_SLOTS)).at[:, a].set(1.0)
            for b in range(N_SLOTS):
                dc = jnp.zeros((B, N_SLOTS)).at[:, b].set(1.0)
                cin = jnp.concatenate([prior, r, tp, atk_prob, ac, dfd_prob, dc], 1)
                c = jnp.maximum(cin @ cw1 + cb1, 0.0) @ cw2 + cb2
                w = atk_prob[:, a:a + 1] * dfd_prob[:, b:b + 1]
                if IS_ATK:
                    y = y + c * w / N_TYPES
                else:
                    y = y + c * w * prior[:, t:t + 1]
    return y


if __name__ == "__main__":
    key = jax.random.PRNGKey(0)
    kp, kprior, kr = jax.random.split(key, 3)

    B = 4
    prior = jax.nn.softmax(jax.random.normal(kprior, (B, N_TYPES), jnp.float32), axis=-1)
    r = jax.random.normal(kr, (B, N_ROUNDS), jnp.float32)
    params = make_params(kp)

    y = model_forward(prior, r, params)
    jax.block_until_ready(y)

    y_ref = reference_forward(prior, r, params)
    assert y.shape == (B, 1)
    assert jnp.allclose(y, y_ref, atol=2e-3, rtol=2e-3), (y, y_ref)

    print("KERNEL_OK")
</pallas_src>

<mosaic_0001>
module attributes {stable_mosaic.version = 11 : i64} {
  func.func @model_kernel(%arg0: i32, %arg1: memref<2x128xf32, #tpu.memory_space<vmem>>, %arg2: memref<2x128xf32, #tpu.memory_space<vmem>>, %arg3: memref<32x6xf32, #tpu.memory_space<vmem>>, %arg4: memref<32x1xf32, #tpu.memory_space<vmem>>, %arg5: memref<2x32xf32, #tpu.memory_space<vmem>>, %arg6: memref<2x1xf32, #tpu.memory_space<vmem>>, %arg7: memref<32x4xf32, #tpu.memory_space<vmem>>, %arg8: memref<32x1xf32, #tpu.memory_space<vmem>>, %arg9: memref<2x32xf32, #tpu.memory_space<vmem>>, %arg10: memref<2x1xf32, #tpu.memory_space<vmem>>, %arg11: memref<32x14xf32, #tpu.memory_space<vmem>>, %arg12: memref<32x1xf32, #tpu.memory_space<vmem>>, %arg13: memref<1x32xf32, #tpu.memory_space<vmem>>, %arg14: memref<1x1xf32, #tpu.memory_space<vmem>>, %arg15: memref<1x128xf32, #tpu.memory_space<vmem>>) attributes {dimension_semantics = [#tpu.dimension_semantics<parallel>], iteration_bounds = array<i64: 1>, scalar_prefetch = 0 : i64, scratch_operands = 0 : i64, tpu.core_type = #tpu.core_type<tc>, window_params = [{transform_indices = @transform_0, window_bounds = array<i64: 2, 128>}, {transform_indices = @transform_1, window_bounds = array<i64: 2, 128>}, {pipeline_mode = #tpu.pipeline_mode<synchronous>, transform_indices = @transform_2, window_bounds = array<i64: 32, 6>}, {pipeline_mode = #tpu.pipeline_mode<synchronous>, transform_indices = @transform_3, window_bounds = array<i64: 32, 1>}, {pipeline_mode = #tpu.pipeline_mode<synchronous>, transform_indices = @transform_4, window_bounds = array<i64: 2, 32>}, {pipeline_mode = #tpu.pipeline_mode<synchronous>, transform_indices = @transform_5, window_bounds = array<i64: 2, 1>}, {pipeline_mode = #tpu.pipeline_mode<synchronous>, transform_indices = @transform_6, window_bounds = array<i64: 32, 4>}, {pipeline_mode = #tpu.pipeline_mode<synchronous>, transform_indices = @transform_7, window_bounds = array<i64: 32, 1>}, {pipeline_mode = #tpu.pipeline_mode<synchronous>, transform_indices = @transform_8, window_bounds = array<i64: 2, 32>}, {pipeline_mode = #tpu.pipeline_mode<synchronous>, transform_indices = @transform_9, window_bounds = array<i64: 2, 1>}, {pipeline_mode = #tpu.pipeline_mode<synchronous>, transform_indices = @transform_10, window_bounds = array<i64: 32, 14>}, {pipeline_mode = #tpu.pipeline_mode<synchronous>, transform_indices = @transform_11, window_bounds = array<i64: 32, 1>}, {pipeline_mode = #tpu.pipeline_mode<synchronous>, transform_indices = @transform_12, window_bounds = array<i64: 1, 32>}, {pipeline_mode = #tpu.pipeline_mode<synchronous>, transform_indices = @transform_13, window_bounds = array<i64: 1, 1>}, {transform_indices = @transform_14, window_bounds = array<i64: 1, 128>}]} {
    %c0 = arith.constant 0 : index
    %c0_0 = arith.constant 0 : index
    %0 = vector.load %arg1[%c0, %c0_0] : memref<2x128xf32, #tpu.memory_space<vmem>>, vector<2x128xf32>
    %c0_1 = arith.constant 0 : index
    %c0_2 = arith.constant 0 : index
    %1 = vector.load %arg2[%c0_1, %c0_2] : memref<2x128xf32, #tpu.memory_space<vmem>>, vector<2x128xf32>
    %c0_3 = arith.constant 0 : index
    %c0_4 = arith.constant 0 : index
    %2 = vector.load %arg3[%c0_3, %c0_4] : memref<32x6xf32, #tpu.memory_space<vmem>>, vector<32x6xf32>
    %c0_5 = arith.constant 0 : index
    %c0_6 = arith.constant 0 : index
    %3 = vector.load %arg4[%c0_5, %c0_6] : memref<32x1xf32, #tpu.memory_space<vmem>>, vector<32x1xf32>
    %c0_7 = arith.constant 0 : index
    %c0_8 = arith.constant 0 : index
    %4 = vector.load %arg5[%c0_7, %c0_8] : memref<2x32xf32, #tpu.memory_space<vmem>>, vector<2x32xf32>
    %c0_9 = arith.constant 0 : index
    %c0_10 = arith.constant 0 : index
    %5 = vector.load %arg6[%c0_9, %c0_10] : memref<2x1xf32, #tpu.memory_space<vmem>>, vector<2x1xf32>
    %c0_11 = arith.constant 0 : index
    %c0_12 = arith.constant 0 : index
    %6 = vector.load %arg7[%c0_11, %c0_12] : memref<32x4xf32, #tpu.memory_space<vmem>>, vector<32x4xf32>
    %c0_13 = arith.constant 0 : index
    %c0_14 = arith.constant 0 : index
    %7 = vector.load %arg8[%c0_13, %c0_14] : memref<32x1xf32, #tpu.memory_space<vmem>>, vector<32x1xf32>
    %c0_15 = arith.constant 0 : index
    %c0_16 = arith.constant 0 : index
    %8 = vector.load %arg9[%c0_15, %c0_16] : memref<2x32xf32, #tpu.memory_space<vmem>>, vector<2x32xf32>
    %c0_17 = arith.constant 0 : index
    %c0_18 = arith.constant 0 : index
    %9 = vector.load %arg10[%c0_17, %c0_18] : memref<2x1xf32, #tpu.memory_space<vmem>>, vector<2x1xf32>
    %c0_19 = arith.constant 0 : index
    %c0_20 = arith.constant 0 : index
    %10 = vector.load %arg11[%c0_19, %c0_20] : memref<32x14xf32, #tpu.memory_space<vmem>>, vector<32x14xf32>
    %c0_21 = arith.constant 0 : index
    %c0_22 = arith.constant 0 : index
    %11 = vector.load %arg12[%c0_21, %c0_22] : memref<32x1xf32, #tpu.memory_space<vmem>>, vector<32x1xf32>
    %c0_23 = arith.constant 0 : index
    %c0_24 = arith.constant 0 : index
    %12 = vector.load %arg13[%c0_23, %c0_24] : memref<1x32xf32, #tpu.memory_space<vmem>>, vector<1x32xf32>
    %c0_25 = arith.constant 0 : index
    %c0_26 = arith.constant 0 : index
    %13 = vector.load %arg14[%c0_25, %c0_26] : memref<1x1xf32, #tpu.memory_space<vmem>>, vector<1x1xf32>
    %14 = vector.extract_strided_slice %6 {offsets = [0, 0], sizes = [32, 1], strides = [1, 1]} : vector<32x4xf32> to vector<32x1xf32>
    %15 = vector.extract_strided_slice %0 {offsets = [0, 0], sizes = [1, 128], strides = [1, 1]} : vector<2x128xf32> to vector<1x128xf32>
    %16 = vector.broadcast %14 : vector<32x1xf32> to vector<32x128xf32>
    %17 = vector.broadcast %15 : vector<1x128xf32> to vector<32x128xf32>
    %18 = arith.mulf %16, %17 : vector<32x128xf32>
    %19 = vector.broadcast %7 : vector<32x1xf32> to vector<32x128xf32>
    %20 = arith.addf %19, %18 : vector<32x128xf32>
    %21 = vector.extract_strided_slice %6 {offsets = [0, 1], sizes = [32, 1], strides = [1, 1]} : vector<32x4xf32> to vector<32x1xf32>
    %22 = vector.extract_strided_slice %0 {offsets = [1, 0], sizes = [1, 128], strides = [1, 1]} : vector<2x128xf32> to vector<1x128xf32>
    %23 = vector.broadcast %21 : vector<32x1xf32> to vector<32x128xf32>
    %24 = vector.broadcast %22 : vector<1x128xf32> to vector<32x128xf32>
    %25 = arith.mulf %23, %24 : vector<32x128xf32>
    %26 = arith.addf %20, %25 : vector<32x128xf32>
    %27 = vector.extract_strided_slice %6 {offsets = [0, 2], sizes = [32, 1], strides = [1, 1]} : vector<32x4xf32> to vector<32x1xf32>
    %28 = vector.extract_strided_slice %1 {offsets = [0, 0], sizes = [1, 128], strides = [1, 1]} : vector<2x128xf32> to vector<1x128xf32>
    %29 = vector.broadcast %27 : vector<32x1xf32> to vector<32x128xf32>
    %30 = vector.broadcast %28 : vector<1x128xf32> to vector<32x128xf32>
    %31 = arith.mulf %29, %30 : vector<32x128xf32>
    %32 = arith.addf %26, %31 : vector<32x128xf32>
    %33 = vector.extract_strided_slice %6 {offsets = [0, 3], sizes = [32, 1], strides = [1, 1]} : vector<32x4xf32> to vector<32x1xf32>
    %34 = vector.extract_strided_slice %1 {offsets = [1, 0], sizes = [1, 128], strides = [1, 1]} : vector<2x128xf32> to vector<1x128xf32>
    %35 = vector.broadcast %33 : vector<32x1xf32> to vector<32x128xf32>
    %36 = vector.broadcast %34 : vector<1x128xf32> to vector<32x128xf32>
    %37 = arith.mulf %35, %36 : vector<32x128xf32>
    %38 = arith.addf %32, %37 : vector<32x128xf32>
    %cst = arith.constant 0.000000e+00 : f32
    %39 = vector.broadcast %cst : f32 to vector<32x128xf32>
    %40 = arith.maximumf %38, %39 : vector<32x128xf32>
    %cst_27 = arith.constant dense<0.000000e+00> : vector<2x128xf32>
    %41 = tpu.matmul %8, %40, %cst_27 {dimension_numbers = #tpu.dot_dimension_numbers<[1], [0], [0], [1], [0, 0, 1, 1], [], []>} : vector<2x32xf32>, vector<32x128xf32>, vector<2x128xf32> -> vector<2x128xf32>
    %42 = vector.broadcast %9 : vector<2x1xf32> to vector<2x128xf32>
    %43 = arith.addf %41, %42 : vector<2x128xf32>
    %44 = vector.extract_strided_slice %43 {offsets = [1, 0], sizes = [1, 128], strides = [1, 1]} : vector<2x128xf32> to vector<1x128xf32>
    %45 = vector.extract_strided_slice %43 {offsets = [0, 0], sizes = [1, 128], strides = [1, 1]} : vector<2x128xf32> to vector<1x128xf32>
    %46 = arith.subf %44, %45 : vector<1x128xf32>
    %47 = math.exp %46 : vector<1x128xf32>
    %cst_28 = arith.constant 1.000000e+00 : f32
    %48 = vector.broadcast %cst_28 : f32 to vector<1x128xf32>
    %49 = arith.addf %48, %47 : vector<1x128xf32>
    %50 = tpu.reciprocal %49 {approx = true} : vector<1x128xf32> -> vector<1x128xf32>
    %cst_29 = arith.constant 1.000000e+00 : f32
    %51 = vector.broadcast %cst_29 : f32 to vector<1x128xf32>
    %52 = arith.subf %51, %50 : vector<1x128xf32>
    %53 = vector.extract_strided_slice %2 {offsets = [0, 0], sizes = [32, 1], strides = [1, 1]} : vector<32x6xf32> to vector<32x1xf32>
    %54 = vector.extract_strided_slice %0 {offsets = [0, 0], sizes = [1, 128], strides = [1, 1]} : vector<2x128xf32> to vector<1x128xf32>
    %55 = vector.broadcast %53 : vector<32x1xf32> to vector<32x128xf32>
    %56 = vector.broadcast %54 : vector<1x128xf32> to vector<32x128xf32>
    %57 = arith.mulf %55, %56 : vector<32x128xf32>
    %58 = vector.broadcast %3 : vector<32x1xf32> to vector<32x128xf32>
    %59 = arith.addf %58, %57 : vector<32x128xf32>
    %60 = vector.extract_strided_slice %2 {offsets = [0, 1], sizes = [32, 1], strides = [1, 1]} : vector<32x6xf32> to vector<32x1xf32>
    %61 = vector.extract_strided_slice %0 {offsets = [1, 0], sizes = [1, 128], strides = [1, 1]} : vector<2x128xf32> to vector<1x128xf32>
    %62 = vector.broadcast %60 : vector<32x1xf32> to vector<32x128xf32>
    %63 = vector.broadcast %61 : vector<1x128xf32> to vector<32x128xf32>
    %64 = arith.mulf %62, %63 : vector<32x128xf32>
    %65 = arith.addf %59, %64 : vector<32x128xf32>
    %66 = vector.extract_strided_slice %2 {offsets = [0, 2], sizes = [32, 1], strides = [1, 1]} : vector<32x6xf32> to vector<32x1xf32>
    %67 = vector.extract_strided_slice %1 {offsets = [0, 0], sizes = [1, 128], strides = [1, 1]} : vector<2x128xf32> to vector<1x128xf32>
    %68 = vector.broadcast %66 : vector<32x1xf32> to vector<32x128xf32>
    %69 = vector.broadcast %67 : vector<1x128xf32> to vector<32x128xf32>
    %70 = arith.mulf %68, %69 : vector<32x128xf32>
    %71 = arith.addf %65, %70 : vector<32x128xf32>
    %72 = vector.extract_strided_slice %2 {offsets = [0, 3], sizes = [32, 1], strides = [1, 1]} : vector<32x6xf32> to vector<32x1xf32>
    %73 = vector.extract_strided_slice %1 {offsets = [1, 0], sizes = [1, 128], strides = [1, 1]} : vector<2x128xf32> to vector<1x128xf32>
    %74 = vector.broadcast %72 : vector<32x1xf32> to vector<32x128xf32>
    %75 = vector.broadcast %73 : vector<1x128xf32> to vector<32x128xf32>
    %76 = arith.mulf %74, %75 : vector<32x128xf32>
    %77 = arith.addf %71, %76 : vector<32x128xf32>
    %78 = vector.extract_strided_slice %2 {offsets = [0, 4], sizes = [32, 1], strides = [1, 1]} : vector<32x6xf32> to vector<32x1xf32>
    %79 = vector.broadcast %78 : vector<32x1xf32> to vector<32x128xf32>
    %80 = arith.addf %77, %79 : vector<32x128xf32>
    %cst_30 = arith.constant 0.000000e+00 : f32
    %81 = vector.broadcast %cst_30 : f32 to vector<32x128xf32>
    %82 = arith.maximumf %80, %81 : vector<32x128xf32>
    %cst_31 = arith.constant dense<0.000000e+00> : vector<2x128xf32>
    %83 = tpu.matmul %4, %82, %cst_31 {dimension_numbers = #tpu.dot_dimension_numbers<[1], [0], [0], [1], [0, 0, 1, 1], [], []>} : vector<2x32xf32>, vector<32x128xf32>, vector<2x128xf32> -> vector<2x128xf32>
    %84 = vector.broadcast %5 : vector<2x1xf32> to vector<2x128xf32>
    %85 = arith.addf %83, %84 : vector<2x128xf32>
    %86 = vector.extract_strided_slice %85 {offsets = [1, 0], sizes = [1, 128], strides = [1, 1]} : vector<2x128xf32> to vector<1x128xf32>
    %87 = vector.extract_strided_slice %85 {offsets = [0, 0], sizes = [1, 128], strides = [1, 1]} : vector<2x128xf32> to vector<1x128xf32>
    %88 = arith.subf %86, %87 : vector<1x128xf32>
    %89 = math.exp %88 : vector<1x128xf32>
    %cst_32 = arith.constant 1.000000e+00 : f32
    %90 = vector.broadcast %cst_32 : f32 to vector<1x128xf32>
    %91 = arith.addf %90, %89 : vector<1x128xf32>
    %92 = tpu.reciprocal %91 {approx = true} : vector<1x128xf32> -> vector<1x128xf32>
    %cst_33 = arith.constant 1.000000e+00 : f32
    %93 = vector.broadcast %cst_33 : f32 to vector<1x128xf32>
    %94 = arith.subf %93, %92 : vector<1x128xf32>
    %95 = vector.extract_strided_slice %2 {offsets = [0, 5], sizes = [32, 1], strides = [1, 1]} : vector<32x6xf32> to vector<32x1xf32>
    %96 = vector.broadcast %95 : vector<32x1xf32> to vector<32x128xf32>
    %97 = arith.addf %77, %96 : vector<32x128xf32>
    %cst_34 = arith.constant 0.000000e+00 : f32
    %98 = vector.broadcast %cst_34 : f32 to vector<32x128xf32>
    %99 = arith.maximumf %97, %98 : vector<32x128xf32>
    %cst_35 = arith.constant dense<0.000000e+00> : vector<2x128xf32>
    %100 = tpu.matmul %4, %99, %cst_35 {dimension_numbers = #tpu.dot_dimension_numbers<[1], [0], [0], [1], [0, 0, 1, 1], [], []>} : vector<2x32xf32>, vector<32x128xf32>, vector<2x128xf32> -> vector<2x128xf32>
    %101 = vector.broadcast %5 : vector<2x1xf32> to vector<2x128xf32>
    %102 = arith.addf %100, %101 : vector<2x128xf32>
    %103 = vector.extract_strided_slice %102 {offsets = [1, 0], sizes = [1, 128], strides = [1, 1]} : vector<2x128xf32> to vector<1x128xf32>
    %104 = vector.extract_strided_slice %102 {offsets = [0, 0], sizes = [1, 128], strides = [1, 1]} : vector<2x128xf32> to vector<1x128xf32>
    %105 = arith.subf %103, %104 : vector<1x128xf32>
    %106 = math.exp %105 : vector<1x128xf32>
    %cst_36 = arith.constant 1.000000e+00 : f32
    %107 = vector.broadcast %cst_36 : f32 to vector<1x128xf32>
    %108 = arith.addf %107, %106 : vector<1x128xf32>
    %109 = tpu.reciprocal %108 {approx = true} : vector<1x128xf32> -> vector<1x128xf32>
    %cst_37 = arith.constant 1.000000e+00 : f32
    %110 = vector.broadcast %cst_37 : f32 to vector<1x128xf32>
    %111 = arith.subf %110, %109 : vector<1x128xf32>
    %112 = vector.extract_strided_slice %10 {offsets = [0, 0], sizes = [32, 1], strides = [1, 1]} : vector<32x14xf32> to vector<32x1xf32>
    %113 = vector.extract_strided_slice %0 {offsets = [0, 0], sizes = [1, 128], strides = [1, 1]} : vector<2x128xf32> to vector<1x128xf32>
    %114 = vector.broadcast %112 : vector<32x1xf32> to vector<32x128xf32>
    %115 = vector.broadcast %113 : vector<1x128xf32> to vector<32x128xf32>
    %116 = arith.mulf %114, %115 : vector<32x128xf32>
    %117 = vector.broadcast %11 : vector<32x1xf32> to vector<32x128xf32>
    %118 = arith.addf %117, %116 : vector<32x128xf32>
    %119 = vector.extract_strided_slice %10 {offsets = [0, 1], sizes = [32, 1], strides = [1, 1]} : vector<32x14xf32> to vector<32x1xf32>
    %120 = vector.extract_strided_slice %0 {offsets = [1, 0], sizes = [1, 128], strides = [1, 1]} : vector<2x128xf32> to vector<1x128xf32>
    %121 = vector.broadcast %119 : vector<32x1xf32> to vector<32x128xf32>
    %122 = vector.broadcast %120 : vector<1x128xf32> to vector<32x128xf32>
    %123 = arith.mulf %121, %122 : vector<32x128xf32>
    %124 = arith.addf %118, %123 : vector<32x128xf32>
    %125 = vector.extract_strided_slice %10 {offsets = [0, 2], sizes = [32, 1], strides = [1, 1]} : vector<32x14xf32> to vector<32x1xf32>
    %126 = vector.extract_strided_slice %1 {offsets = [0, 0], sizes = [1, 128], strides = [1, 1]} : vector<2x128xf32> to vector<1x128xf32>
    %127 = vector.broadcast %125 : vector<32x1xf32> to vector<32x128xf32>
    %128 = vector.broadcast %126 : vector<1x128xf32> to vector<32x128xf32>
    %129 = arith.mulf %127, %128 : vector<32x128xf32>
    %130 = arith.addf %124, %129 : vector<32x128xf32>
    %131 = vector.extract_strided_slice %10 {offsets = [0, 3], sizes = [32, 1], strides = [1, 1]} : vector<32x14xf32> to vector<32x1xf32>
    %132 = vector.extract_strided_slice %1 {offsets = [1, 0], sizes = [1, 128], strides = [1, 1]} : vector<2x128xf32> to vector<1x128xf32>
    %133 = vector.broadcast %131 : vector<32x1xf32> to vector<32x128xf32>
    %134 = vector.broadcast %132 : vector<1x128xf32> to vector<32x128xf32>
    %135 = arith.mulf %133, %134 : vector<32x128xf32>
    %136 = arith.addf %130, %135 : vector<32x128xf32>
    %137 = vector.extract_strided_slice %10 {offsets = [0, 10], sizes = [32, 1], strides = [1, 1]} : vector<32x14xf32> to vector<32x1xf32>
    %138 = vector.broadcast %137 : vector<32x1xf32> to vector<32x128xf32>
    %139 = vector.broadcast %50 : vector<1x128xf32> to vector<32x128xf32>
    %140 = arith.mulf %138, %139 : vector<32x128xf32>
    %141 = arith.addf %136, %140 : vector<32x128xf32>
    %142 = vector.extract_strided_slice %10 {offsets = [0, 11], sizes = [32, 1], strides = [1, 1]} : vector<32x14xf32> to vector<32x1xf32>
    %143 = vector.broadcast %142 : vector<32x1xf32> to vector<32x128xf32>
    %144 = vector.broadcast %52 : vector<1x128xf32> to vector<32x128xf32>
    %145 = arith.mulf %143, %144 : vector<32x128xf32>
    %146 = arith.addf %141, %145 : vector<32x128xf32>
    %cst_38 = arith.constant 0.000000e+00 : f32
    %147 = vector.broadcast %cst_38 : f32 to vector<32x128xf32>
    %148 = vector.extract_strided_slice %10 {offsets = [0, 4], sizes = [32, 1], strides = [1, 1]} : vector<32x14xf32> to vector<32x1xf32>
    %149 = vector.broadcast %148 : vector<32x1xf32> to vector<32x128xf32>
    %150 = arith.addf %146, %149 : vector<32x128xf32>
    %151 = vector.extract_strided_slice %10 {offsets = [0, 6], sizes = [32, 1], strides = [1, 1]} : vector<32x14xf32> to vector<32x1xf32>
    %152 = vector.broadcast %151 : vector<32x1xf32> to vector<32x128xf32>
    %153 = vector.broadcast %92 : vector<1x128xf32> to vector<32x128xf32>
    %154 = arith.mulf %152, %153 : vector<32x128xf32>
    %155 = arith.addf %150, %154 : vector<32x128xf32>
    %156 = vector.extract_strided_slice %10 {offsets = [0, 7], sizes = [32, 1], strides = [1, 1]} : vector<32x14xf32> to vector<32x1xf32>
    %157 = vector.broadcast %156 : vector<32x1xf32> to vector<32x128xf32>
    %158 = vector.broadcast %94 : vector<1x128xf32> to vector<32x128xf32>
    %159 = arith.mulf %157, %158 : vector<32x128xf32>
    %160 = arith.addf %155, %159 : vector<32x128xf32>
    %cst_39 = arith.constant 5.000000e-01 : f32
    %161 = vector.broadcast %cst_39 : f32 to vector<1x128xf32>
    %162 = arith.mulf %92, %161 : vector<1x128xf32>
    %163 = vector.extract_strided_slice %10 {offsets = [0, 8], sizes = [32, 1], strides = [1, 1]} : vector<32x14xf32> to vector<32x1xf32>
    %164 = vector.extract_strided_slice %10 {offsets = [0, 12], sizes = [32, 1], strides = [1, 1]} : vector<32x14xf32> to vector<32x1xf32>
    %165 = arith.addf %163, %164 : vector<32x1xf32>
    %166 = vector.broadcast %165 : vector<32x1xf32> to vector<32x128xf32>
    %167 = arith.addf %160, %166 : vector<32x128xf32>
    %cst_40 = arith.constant 0.000000e+00 : f32
    %168 = vector.broadcast %cst_40 : f32 to vector<32x128xf32>
    %169 = arith.maximumf %167, %168 : vector<32x128xf32>
    %170 = arith.mulf %162, %50 : vector<1x128xf32>
    %171 = vector.broadcast %170 : vector<1x128xf32> to vector<32x128xf32>
    %172 = arith.mulf %169, %171 : vector<32x128xf32>
    %173 = arith.addf %147, %172 : vector<32x128xf32>
    %174 = vector.extract_strided_slice %10 {offsets = [0, 13], sizes = [32, 1], strides = [1, 1]} : vector<32x14xf32> to vector<32x1xf32>
    %175 = arith.addf %163, %174 : vector<32x1xf32>
    %176 = vector.broadcast %175 : vector<32x1xf32> to vector<32x128xf32>
    %177 = arith.addf %160, %176 : vector<32x128xf32>
    %cst_41 = arith.constant 0.000000e+00 : f32
    %178 = vector.broadcast %cst_41 : f32 to vector<32x128xf32>
    %179 = arith.maximumf %177, %178 : vector<32x128xf32>
    %180 = arith.mulf %162, %52 : vector<1x128xf32>
    %181 = vector.broadcast %180 : vector<1x128xf32> to vector<32x128xf32>
    %182 = arith.mulf %179, %181 : vector<32x128xf32>
    %183 = arith.addf %173, %182 : vector<32x128xf32>
    %cst_42 = arith.constant 5.000000e-01 : f32
    %184 = vector.broadcast %cst_42 : f32 to vector<1x128xf32>
    %185 = arith.mulf %94, %184 : vector<1x128xf32>
    %186 = vector.extract_strided_slice %10 {offsets = [0, 9], sizes = [32, 1], strides = [1, 1]} : vector<32x14xf32> to vector<32x1xf32>
    %187 = vector.extract_strided_slice %10 {offsets = [0, 12], sizes = [32, 1], strides = [1, 1]} : vector<32x14xf32> to vector<32x1xf32>
    %188 = arith.addf %186, %187 : vector<32x1xf32>
    %189 = vector.broadcast %188 : vector<32x1xf32> to vector<32x128xf32>
    %190 = arith.addf %160, %189 : vector<32x128xf32>
    %cst_43 = arith.constant 0.000000e+00 : f32
    %191 = vector.broadcast %cst_43 : f32 to vector<32x128xf32>
    %192 = arith.maximumf %190, %191 : vector<32x128xf32>
    %193 = arith.mulf %185, %50 : vector<1x128xf32>
    %194 = vector.broadcast %193 : vector<1x128xf32> to vector<32x128xf32>
    %195 = arith.mulf %192, %194 : vector<32x128xf32>
    %196 = arith.addf %183, %195 : vector<32x128xf32>
    %197 = vector.extract_strided_slice %10 {offsets = [0, 13], sizes = [32, 1], strides = [1, 1]} : vector<32x14xf32> to vector<32x1xf32>
    %198 = arith.addf %186, %197 : vector<32x1xf32>
    %199 = vector.broadcast %198 : vector<32x1xf32> to vector<32x128xf32>
    %200 = arith.addf %160, %199 : vector<32x128xf32>
    %cst_44 = arith.constant 0.000000e+00 : f32
    %201 = vector.broadcast %cst_44 : f32 to vector<32x128xf32>
    %202 = arith.maximumf %200, %201 : vector<32x128xf32>
    %203 = arith.mulf %185, %52 : vector<1x128xf32>
    %204 = vector.broadcast %203 : vector<1x128xf32> to vector<32x128xf32>
    %205 = arith.mulf %202, %204 : vector<32x128xf32>
    %206 = arith.addf %196, %205 : vector<32x128xf32>
    %207 = vector.extract_strided_slice %10 {offsets = [0, 5], sizes = [32, 1], strides = [1, 1]} : vector<32x14xf32> to vector<32x1xf32>
    %208 = vector.broadcast %207 : vector<32x1xf32> to vector<32x128xf32>
    %209 = arith.addf %146, %208 : vector<32x128xf32>
    %210 = vector.extract_strided_slice %10 {offsets = [0, 6], sizes = [32, 1], strides = [1, 1]} : vector<32x14xf32> to vector<32x1xf32>
    %211 = vector.broadcast %210 : vector<32x1xf32> to vector<32x128xf32>
    %212 = vector.broadcast %109 : vector<1x128xf32> to vector<32x128xf32>
    %213 = arith.mulf %211, %212 : vector<32x128xf32>
    %214 = arith.addf %209, %213 : vector<32x128xf32>
    %215 = vector.extract_strided_slice %10 {offsets = [0, 7], sizes = [32, 1], strides = [1, 1]} : vector<32x14xf32> to vector<32x1xf32>
    %216 = vector.broadcast %215 : vector<32x1xf32> to vector<32x128xf32>
    %217 = vector.broadcast %111 : vector<1x128xf32> to vector<32x128xf32>
    %218 = arith.mulf %216, %217 : vector<32x128xf32>
    %219 = arith.addf %214, %218 : vector<32x128xf32>
    %cst_45 = arith.constant 5.000000e-01 : f32
    %220 = vector.broadcast %cst_45 : f32 to vector<1x128xf32>
    %221 = arith.mulf %109, %220 : vector<1x128xf32>
    %222 = vector.extract_strided_slice %10 {offsets = [0, 8], sizes = [32, 1], strides = [1, 1]} : vector<32x14xf32> to vector<32x1xf32>
    %223 = vector.extract_strided_slice %10 {offsets = [0, 12], sizes = [32, 1], strides = [1, 1]} : vector<32x14xf32> to vector<32x1xf32>
    %224 = arith.addf %222, %223 : vector<32x1xf32>
    %225 = vector.broadcast %224 : vector<32x1xf32> to vector<32x128xf32>
    %226 = arith.addf %219, %225 : vector<32x128xf32>
    %cst_46 = arith.constant 0.000000e+00 : f32
    %227 = vector.broadcast %cst_46 : f32 to vector<32x128xf32>
    %228 = arith.maximumf %226, %227 : vector<32x128xf32>
    %229 = arith.mulf %221, %50 : vector<1x128xf32>
    %230 = vector.broadcast %229 : vector<1x128xf32> to vector<32x128xf32>
    %231 = arith.mulf %228, %230 : vector<32x128xf32>
    %232 = arith.addf %206, %231 : vector<32x128xf32>
    %233 = vector.extract_strided_slice %10 {offsets = [0, 13], sizes = [32, 1], strides = [1, 1]} : vector<32x14xf32> to vector<32x1xf32>
    %234 = arith.addf %222, %233 : vector<32x1xf32>
    %235 = vector.broadcast %234 : vector<32x1xf32> to vector<32x128xf32>
    %236 = arith.addf %219, %235 : vector<32x128xf32>
    %cst_47 = arith.constant 0.000000e+00 : f32
    %237 = vector.broadcast %cst_47 : f32 to vector<32x128xf32>
    %238 = arith.maximumf %236, %237 : vector<32x128xf32>
    %239 = arith.mulf %221, %52 : vector<1x128xf32>
    %240 = vector.broadcast %239 : vector<1x128xf32> to vector<32x128xf32>
    %241 = arith.mulf %238, %240 : vector<32x128xf32>
    %242 = arith.addf %232, %241 : vector<32x128xf32>
    %cst_48 = arith.constant 5.000000e-01 : f32
    %243 = vector.broadcast %cst_48 : f32 to vector<1x128xf32>
    %244 = arith.mulf %111, %243 : vector<1x128xf32>
    %245 = vector.extract_strided_slice %10 {offsets = [0, 9], sizes = [32, 1], strides = [1, 1]} : vector<32x14xf32> to vector<32x1xf32>
    %246 = vector.extract_strided_slice %10 {offsets = [0, 12], sizes = [32, 1], strides = [1, 1]} : vector<32x14xf32> to vector<32x1xf32>
    %247 = arith.addf %245, %246 : vector<32x1xf32>
    %248 = vector.broadcast %247 : vector<32x1xf32> to vector<32x128xf32>
    %249 = arith.addf %219, %248 : vector<32x128xf32>
    %cst_49 = arith.constant 0.000000e+00 : f32
    %250 = vector.broadcast %cst_49 : f32 to vector<32x128xf32>
    %251 = arith.maximumf %249, %250 : vector<32x128xf32>
    %252 = arith.mulf %244, %50 : vector<1x128xf32>
    %253 = vector.broadcast %252 : vector<1x128xf32> to vector<32x128xf32>
    %254 = arith.mulf %251, %253 : vector<32x128xf32>
    %255 = arith.addf %242, %254 : vector<32x128xf32>
    %256 = vector.extract_strided_slice %10 {offsets = [0, 13], sizes = [32, 1], strides = [1, 1]} : vector<32x14xf32> to vector<32x1xf32>
    %257 = arith.addf %245, %256 : vector<32x1xf32>
    %258 = vector.broadcast %257 : vector<32x1xf32> to vector<32x128xf32>
    %259 = arith.addf %219, %258 : vector<32x128xf32>
    %cst_50 = arith.constant 0.000000e+00 : f32
    %260 = vector.broadcast %cst_50 : f32 to vector<32x128xf32>
    %261 = arith.maximumf %259, %260 : vector<32x128xf32>
    %262 = arith.mulf %244, %52 : vector<1x128xf32>
    %263 = vector.broadcast %262 : vector<1x128xf32> to vector<32x128xf32>
    %264 = arith.mulf %261, %263 : vector<32x128xf32>
    %265 = arith.addf %255, %264 : vector<32x128xf32>
    %cst_51 = arith.constant dense<0.000000e+00> : vector<1x128xf32>
    %266 = tpu.matmul %12, %265, %cst_51 {dimension_numbers = #tpu.dot_dimension_numbers<[1], [0], [0], [1], [0, 0, 1, 1], [], []>} : vector<1x32xf32>, vector<32x128xf32>, vector<1x128xf32> -> vector<1x128xf32>
    %267 = vector.broadcast %13 : vector<1x1xf32> to vector<1x128xf32>
    %268 = arith.addf %266, %267 : vector<1x128xf32>
    %c0_52 = arith.constant 0 : index
    %c0_53 = arith.constant 0 : index
    %269 = vector.load %arg15[%c0_52, %c0_53] : memref<1x128xf32, #tpu.memory_space<vmem>>, vector<1x128xf32>
    tpu.vector_store %arg15[%c0_52, %c0_53], %268 {strides = array<i32>} : memref<1x128xf32, #tpu.memory_space<vmem>>, vector<1x128xf32>,
    return
  }
  func.func @transform_0(%arg0: i32) -> (i32, i32) {
    %c0_i32 = arith.constant 0 : i32
    %c0_i32_0 = arith.constant 0 : i32
    return %c0_i32, %arg0 : i32, i32
  }
  func.func @transform_1(%arg0: i32) -> (i32, i32) {
    %c0_i32 = arith.constant 0 : i32
    %c0_i32_0 = arith.constant 0 : i32
    return %c0_i32, %arg0 : i32, i32
  }
  func.func @transform_2(%arg0: i32) -> (i32, i32) {
    %c0_i32 = arith.constant 0 : i32
    %c0_i32_0 = arith.constant 0 : i32
    %c0_i32_1 = arith.constant 0 : i32
    return %c0_i32, %c0_i32_0 : i32, i32
  }
  func.func @transform_3(%arg0: i32) -> (i32, i32) {
    %c0_i32 = arith.constant 0 : i32
    %c0_i32_0 = arith.constant 0 : i32
    %c0_i32_1 = arith.constant 0 : i32
    return %c0_i32, %c0_i32_0 : i32, i32
  }
  func.func @transform_4(%arg0: i32) -> (i32, i32) {
    %c0_i32 = arith.constant 0 : i32
    %c0_i32_0 = arith.constant 0 : i32
    %c0_i32_1 = arith.constant 0 : i32
    return %c0_i32, %c0_i32_0 : i32, i32
  }
  func.func @transform_5(%arg0: i32) -> (i32, i32) {
    %c0_i32 = arith.constant 0 : i32
    %c0_i32_0 = arith.constant 0 : i32
    %c0_i32_1 = arith.constant 0 : i32
    return %c0_i32, %c0_i32_0 : i32, i32
  }
  func.func @transform_6(%arg0: i32) -> (i32, i32) {
    %c0_i32 = arith.constant 0 : i32
    %c0_i32_0 = arith.constant 0 : i32
    %c0_i32_1 = arith.constant 0 : i32
    return %c0_i32, %c0_i32_0 : i32, i32
  }
  func.func @transform_7(%arg0: i32) -> (i32, i32) {
    %c0_i32 = arith.constant 0 : i32
    %c0_i32_0 = arith.constant 0 : i32
    %c0_i32_1 = arith.constant 0 : i32
    return %c0_i32, %c0_i32_0 : i32, i32
  }
  func.func @transform_8(%arg0: i32) -> (i32, i32) {
    %c0_i32 = arith.constant 0 : i32
    %c0_i32_0 = arith.constant 0 : i32
    %c0_i32_1 = arith.constant 0 : i32
    return %c0_i32, %c0_i32_0 : i32, i32
  }
  func.func @transform_9(%arg0: i32) -> (i32, i32) {
    %c0_i32 = arith.constant 0 : i32
    %c0_i32_0 = arith.constant 0 : i32
    %c0_i32_1 = arith.constant 0 : i32
    return %c0_i32, %c0_i32_0 : i32, i32
  }
  func.func @transform_10(%arg0: i32) -> (i32, i32) {
    %c0_i32 = arith.constant 0 : i32
    %c0_i32_0 = arith.constant 0 : i32
    %c0_i32_1 = arith.constant 0 : i32
    return %c0_i32, %c0_i32_0 : i32, i32
  }
  func.func @transform_11(%arg0: i32) -> (i32, i32) {
    %c0_i32 = arith.constant 0 : i32
    %c0_i32_0 = arith.constant 0 : i32
    %c0_i32_1 = arith.constant 0 : i32
    return %c0_i32, %c0_i32_0 : i32, i32
  }
  func.func @transform_12(%arg0: i32) -> (i32, i32) {
    %c0_i32 = arith.constant 0 : i32
    %c0_i32_0 = arith.constant 0 : i32
    %c0_i32_1 = arith.constant 0 : i32
    return %c0_i32, %c0_i32_0 : i32, i32
  }
  func.func @transform_13(%arg0: i32) -> (i32, i32) {
    %c0_i32 = arith.constant 0 : i32
    %c0_i32_0 = arith.constant 0 : i32
    %c0_i32_1 = arith.constant 0 : i32
    return %c0_i32, %c0_i32_0 : i32, i32
  }
  func.func @transform_14(%arg0: i32) -> (i32, i32) {
    %c0_i32 = arith.constant 0 : i32
    %c0_i32_0 = arith.constant 0 : i32
    return %c0_i32, %arg0 : i32, i32
  }
}

</mosaic_0001>

<llo_original>
// kernel: model_forward.1
$region0: #{model_forward.1}
  #allocation0 [shape = 'u32[]', space=smem, size = 0x4, offset = 0x4, fixed_abs, tag = 'smem constant byte address 0x4 - core index']
  #allocation1 [shape = 'u32[144,128]{1,0:T(1,128)}', space=vmem, size = 0x12000, scoped, tag = 'internal scratch']
  #allocation2 [shape = 'f32[1,1]{1,0:T(1,128)S(1)}', space=vmem, size = 0x200, scoped, tag = 'scoped memory for model_forward.1']
  %s0 = inlined_call_operand.vmem [shape: f32[2,128], index: 0, kind: input, shape index: {}]
  %s1 = inlined_call_operand.vmem [shape: f32[2,128], index: 1, kind: input, shape index: {}]
  %s2 = inlined_call_operand.vmem [shape: f32[32,6], index: 2, kind: input, shape index: {}]
  %s3 = inlined_call_operand.vmem [shape: f32[32,1], index: 3, kind: input, shape index: {}]
  %s4 = inlined_call_operand.vmem [shape: f32[2,32], index: 4, kind: input, shape index: {}]
  %s5 = inlined_call_operand.vmem [shape: f32[2,1], index: 5, kind: input, shape index: {}]
  %s6 = inlined_call_operand.vmem [shape: f32[32,4], index: 6, kind: input, shape index: {}]
  %s7 = inlined_call_operand.vmem [shape: f32[32,1], index: 7, kind: input, shape index: {}]
  %s8 = inlined_call_operand.vmem [shape: f32[2,32], index: 8, kind: input, shape index: {}]
  %s9 = inlined_call_operand.vmem [shape: f32[2,1], index: 9, kind: input, shape index: {}]
  %s10 = inlined_call_operand.vmem [shape: f32[32,14], index: 10, kind: input, shape index: {}]
  %s11 = inlined_call_operand.vmem [shape: f32[32,1], index: 11, kind: input, shape index: {}]
  %s12 = inlined_call_operand.vmem [shape: f32[1,32], index: 12, kind: input, shape index: {}]
  %s13 = inlined_call_operand.<no memory space> [shape: f32[1,1], index: 13, kind: input, shape index: {}]
  %s14 = inlined_call_operand.vmem [shape: f32[1,128], index: 14, kind: output, shape index: {}]
  %s15 = sld [smem:[#allocation0]]
  $region66: #{model_forward.1} parent=0
    _
  %s17 = ssub.s32 1, %s15
  %s18 = scalar_select 0, %s17, %s15
  %v19 = vstv %s13
  %20 = vst [vmem:[#allocation2] sm:$0x1] %v19
  // Predicated region
  $region2: #{model_forward.1} parent=0 // pred_check
    _
  $region3: #{model_forward.1} parent=0 // pred_check_branch
    %22 = sbr.rel (0) target = $region5
  $region4: #{model_forward.1} parent=0 // pred_region
    _
  $region5: #{model_forward.1} parent=0 // pred_fallthru
    _
  // Predicated region
  $region6: #{model_forward.1} parent=0 // pred_check
    _
  $region7: #{model_forward.1} parent=0 // pred_check_branch
    %24 = sbr.rel (0) target = $region9
  $region8: #{model_forward.1} parent=0 // pred_region
    _
  $region9: #{model_forward.1} parent=0 // pred_fallthru
    _
  // Predicated region
  $region10: #{model_forward.1} parent=0 // pred_check
    _
  $region11: #{model_forward.1} parent=0 // pred_check_branch
    %26 = sbr.rel (0) target = $region13
  $region12: #{model_forward.1} parent=0 // pred_region
    _
  $region13: #{model_forward.1} parent=0 // pred_fallthru
    _
  // Predicated region
  $region14: #{model_forward.1} parent=0 // pred_check
    _
  $region15: #{model_forward.1} parent=0 // pred_check_branch
    %28 = sbr.rel (0) target = $region17
  $region16: #{model_forward.1} parent=0 // pred_region
    _
  $region17: #{model_forward.1} parent=0 // pred_fallthru
    _
  // Predicated region
  $region18: #{model_forward.1} parent=0 // pred_check
    _
  $region19: #{model_forward.1} parent=0 // pred_check_branch
    %30 = sbr.rel (0) target = $region21
  $region20: #{model_forward.1} parent=0 // pred_region
    _
  $region21: #{model_forward.1} parent=0 // pred_fallthru
    _
  // Predicated region
  $region22: #{model_forward.1} parent=0 // pred_check
    _
  $region23: #{model_forward.1} parent=0 // pred_check_branch
    %32 = sbr.rel (0) target = $region25
  $region24: #{model_forward.1} parent=0 // pred_region
    _
  $region25: #{model_forward.1} parent=0 // pred_fallthru
    _
  // Predicated region
  $region26: #{model_forward.1} parent=0 // pred_check
    _
  $region27: #{model_forward.1} parent=0 // pred_check_branch
    %34 = sbr.rel (0) target = $region29
  $region28: #{model_forward.1} parent=0 // pred_region
    _
  $region29: #{model_forward.1} parent=0 // pred_fallthru
    _
  // Predicated region
  $region30: #{model_forward.1} parent=0 // pred_check
    _
  $region31: #{model_forward.1} parent=0 // pred_check_branch
    %36 = sbr.rel (0) target = $region33
  $region32: #{model_forward.1} parent=0 // pred_region
    _
  $region33: #{model_forward.1} parent=0 // pred_fallthru
    _
  // Predicated region
  $region34: #{model_forward.1} parent=0 // pred_check
    _
  $region35: #{model_forward.1} parent=0 // pred_check_branch
    %38 = sbr.rel (0) target = $region37
  $region36: #{model_forward.1} parent=0 // pred_region
    _
  $region37: #{model_forward.1} parent=0 // pred_fallthru
    _
  // Predicated region
  $region38: #{model_forward.1} parent=0 // pred_check
    _
  $region39: #{model_forward.1} parent=0 // pred_check_branch
    %40 = sbr.rel (0) target = $region41
  $region40: #{model_forward.1} parent=0 // pred_region
    _
  $region41: #{model_forward.1} parent=0 // pred_fallthru
    _
  // Predicated region
  $region42: #{model_forward.1} parent=0 // pred_check
    _
  $region43: #{model_forward.1} parent=0 // pred_check_branch
    %42 = sbr.rel (0) target = $region45
  $region44: #{model_forward.1} parent=0 // pred_region
    _
  $region45: #{model_forward.1} parent=0 // pred_fallthru
    _
  // Predicated region
  $region46: #{model_forward.1} parent=0 // pred_check
    _
  $region47: #{model_forward.1} parent=0 // pred_check_branch
    %44 = sbr.rel (0) target = $region49
  $region48: #{model_forward.1} parent=0 // pred_region
    _
  $region49: #{model_forward.1} parent=0 // pred_fallthru
    _
  // Predicated region
  $region50: #{model_forward.1} parent=0 // pred_check
    _
  $region51: #{model_forward.1} parent=0 // pred_check_branch
    %46 = sbr.rel (0) target = $region53
  $region52: #{model_forward.1} parent=0 // pred_region
    _
  $region53: #{model_forward.1} parent=0 // pred_fallthru
    _
  // Predicated region
  $region54: #{model_forward.1} parent=0 // pred_check
    _
  $region55: #{model_forward.1} parent=0 // pred_check_branch
    %48 = sbr.rel (0) target = $region57
  $region56: #{model_forward.1} parent=0 // pred_region
    _
  $region57: #{model_forward.1} parent=0 // pred_fallthru
    _
  %v49 = vld [vmem:[%s0] sm:$0x3]
  %v50 = vld [vmem:[%s1] sm:$0x3]
  %v51 = vld [vmem:[%s2] sm:$0xff]
  %v52 = vld [vmem:[%s2 + $0x8] sm:$0xff]
  %v53 = vld [vmem:[%s2 + $0x10] sm:$0xff]
  %v54 = vld [vmem:[%s2 + $0x18] sm:$0xff]
  %v55 = vld [vmem:[%s3] sm:$0xff]
  %v56 = vld [vmem:[%s3 + $0x8] sm:$0xff]
  %v57 = vld [vmem:[%s3 + $0x10] sm:$0xff]
  %v58 = vld [vmem:[%s3 + $0x18] sm:$0xff]
  %v59 = vld [vmem:[%s4] sm:$0x3]
  %v60 = vld [vmem:[%s5] sm:$0x3]
  %v61 = vld [vmem:[%s6] sm:$0xff]
  %v62 = vld [vmem:[%s6 + $0x8] sm:$0xff]
  %v63 = vld [vmem:[%s6 + $0x10] sm:$0xff]
  %v64 = vld [vmem:[%s6 + $0x18] sm:$0xff]
  %v65 = vld [vmem:[%s7] sm:$0xff]
  %v66 = vld [vmem:[%s7 + $0x8] sm:$0xff]
  %v67 = vld [vmem:[%s7 + $0x10] sm:$0xff]
  %v68 = vld [vmem:[%s7 + $0x18] sm:$0xff]
  %v69 = vld [vmem:[%s8] sm:$0x3]
  %v70 = vld [vmem:[%s9] sm:$0x3]
  %v71 = vld [vmem:[%s10] sm:$0xff]
  %v72 = vld [vmem:[%s10 + $0x8] sm:$0xff]
  %v73 = vld [vmem:[%s10 + $0x10] sm:$0xff]
  %v74 = vld [vmem:[%s10 + $0x18] sm:$0xff]
  %v75 = vld [vmem:[%s11] sm:$0xff]
  %v76 = vld [vmem:[%s11 + $0x8] sm:$0xff]
  %v77 = vld [vmem:[%s11 + $0x10] sm:$0xff]
  %v78 = vld [vmem:[%s11 + $0x18] sm:$0xff]
  %v79 = vld [vmem:[%s12] sm:$0x1]
  %v80 = vld [vmem:[#allocation2] sm:$0x1]
  %82 = vset.pattern.permute.xlu0 0
  %83 = vperm.xlu0 %82, %v61
  %v84 = vpop.permute.xlu0 %83
  %87 = vset.pattern.permute.xlu0 0
  %88 = vperm.xlu0 %87, %v62
  %v89 = vpop.permute.xlu0 %88
  %92 = vset.pattern.permute.xlu0 0
  %93 = vperm.xlu0 %92, %v63
  %v94 = vpop.permute.xlu0 %93
  %97 = vset.pattern.permute.xlu0 0
  %98 = vperm.xlu0 %97, %v64
  %v99 = vpop.permute.xlu0 %98
  %v101 = vlaneseq
  %v102 = vshrl.u32 %v101, 7
  %v103 = vsub.s32 0, %v102
  %v104 = vrot.slane %v49, %v103
  %v105 = vmul.f32 %v84, %v104
  %v106 = vmul.f32 %v89, %v104
  %v107 = vmul.f32 %v94, %v104
  %v108 = vmul.f32 %v99, %v104
  %110 = vset.pattern.permute.xlu0 0
  %111 = vperm.xlu0 %110, %v65
  %v112 = vpop.permute.xlu0 %111
  %115 = vset.pattern.permute.xlu0 0
  %116 = vperm.xlu0 %115, %v66
  %v117 = vpop.permute.xlu0 %116
  %120 = vset.pattern.permute.xlu0 0
  %121 = vperm.xlu0 %120, %v67
  %v122 = vpop.permute.xlu0 %121
  %125 = vset.pattern.permute.xlu0 0
  %126 = vperm.xlu0 %125, %v68
  %v127 = vpop.permute.xlu0 %126
  %v129 = vadd.f32 %v112, %v105
  %v130 = vadd.f32 %v117, %v106
  %v131 = vadd.f32 %v122, %v107
  %v132 = vadd.f32 %v127, %v108
  %133 = vset.pattern.permute.xlu0 1
  %134 = vperm.xlu0 %133, %v61
  %v135 = vpop.permute.xlu0 %134
  %137 = vset.pattern.permute.xlu0 1
  %138 = vperm.xlu0 %137, %v62
  %v139 = vpop.permute.xlu0 %138
  %141 = vset.pattern.permute.xlu0 1
  %142 = vperm.xlu0 %141, %v63
  %v143 = vpop.permute.xlu0 %142
  %145 = vset.pattern.permute.xlu0 1
  %146 = vperm.xlu0 %145, %v64
  %v147 = vpop.permute.xlu0 %146
  %v149 = vlaneseq
  %v150 = vshrl.u32 %v149, 7
  %v151 = vsub.s32 1, %v150
  %v152 = vrot.slane %v49, %v151
  %v153 = vmul.f32 %v135, %v152
  %v154 = vmul.f32 %v139, %v152
  %v155 = vmul.f32 %v143, %v152
  %v156 = vmul.f32 %v147, %v152
  %v157 = vadd.f32 %v129, %v153
  %v158 = vadd.f32 %v130, %v154
  %v159 = vadd.f32 %v131, %v155
  %v160 = vadd.f32 %v132, %v156
  %161 = vset.pattern.permute.xlu0 2
  %162 = vperm.xlu0 %161, %v61
  %v163 = vpop.permute.xlu0 %162
  %165 = vset.pattern.permute.xlu0 2
  %166 = vperm.xlu0 %165, %v62
  %v167 = vpop.permute.xlu0 %166
  %169 = vset.pattern.permute.xlu0 2
  %170 = vperm.xlu0 %169, %v63
  %v171 = vpop.permute.xlu0 %170
  %173 = vset.pattern.permute.xlu0 2
  %174 = vperm.xlu0 %173, %v64
  %v175 = vpop.permute.xlu0 %174
  %v177 = vlaneseq
  %v178 = vshrl.u32 %v177, 7
  %v179 = vsub.s32 0, %v178
  %v180 = vrot.slane %v50, %v179
  %v181 = vmul.f32 %v163, %v180
  %v182 = vmul.f32 %v167, %v180
  %v183 = vmul.f32 %v171, %v180
  %v184 = vmul.f32 %v175, %v180
  %v185 = vadd.f32 %v157, %v181
  %v186 = vadd.f32 %v158, %v182
  %v187 = vadd.f32 %v159, %v183
  %v188 = vadd.f32 %v160, %v184
  %189 = vset.pattern.permute.xlu0 3
  %190 = vperm.xlu0 %189, %v61
  %v191 = vpop.permute.xlu0 %190
  %193 = vset.pattern.permute.xlu0 3
  %194 = vperm.xlu0 %193, %v62
  %v195 = vpop.permute.xlu0 %194
  %197 = vset.pattern.permute.xlu0 3
  %198 = vperm.xlu0 %197, %v63
  %v199 = vpop.permute.xlu0 %198
  %201 = vset.pattern.permute.xlu0 3
  %202 = vperm.xlu0 %201, %v64
  %v203 = vpop.permute.xlu0 %202
  %v205 = vlaneseq
  %v206 = vshrl.u32 %v205, 7
  %v207 = vsub.s32 1, %v206
  %v208 = vrot.slane %v50, %v207
  %v209 = vmul.f32 %v191, %v208
  %v210 = vmul.f32 %v195, %v208
  %v211 = vmul.f32 %v199, %v208
  %v212 = vmul.f32 %v203, %v208
  %v213 = vadd.f32 %v185, %v209
  %v214 = vadd.f32 %v186, %v210
  %v215 = vadd.f32 %v187, %v211
  %v216 = vadd.f32 %v188, %v212
  %v217 = vmax.f32 %v213, 0.0
  %v218 = vmax.f32 %v214, 0.0
  %v219 = vmax.f32 %v215, 0.0
  %v220 = vmax.f32 %v216, 0.0
  %222 = vset.pattern.permute.xlu0 0
  %223 = vperm.xlu0 %222, %v70
  %v224 = vpop.permute.xlu0 %223
  %vm226 = vcmask 261120
  %v228 = vsel %vm226, %v69, 0
  %230 = vmatprep.subr.mxu0 0.0
  %231 = vmatpush1.msra.mxu0 %v217
  %232 = vmatprep.subr.mxu0 0.0
  %233 = vmatpush1.msra.mxu0 %v218
  %234 = vmatprep.subr.mxu0 0.0
  %235 = vmatpush1.msra.mxu0 %v219
  %236 = vmatprep.subr.mxu0 0.0
  %237 = vmatpush1.msra.mxu0 %v220
  %238 = vmatprep.subr.mxu0 0.0
  %239 = vmatpush1.msra.mxu0 0.0
  %240 = vmatprep.subr.mxu0 0.0
  %241 = vmatpush1.msra.mxu0 0.0
  %242 = vmatprep.subr.mxu0 0.0
  %243 = vmatpush1.msra.mxu0 0.0
  %244 = vmatprep.subr.mxu0 0.0
  %245 = vmatpush1.msra.mxu0 0.0
  %246 = vmatprep.subr.mxu0 0.0
  %247 = vmatpush1.msra.mxu0 0.0
  %248 = vmatprep.subr.mxu0 0.0
  %249 = vmatpush1.msra.mxu0 0.0
  %250 = vmatprep.subr.mxu0 0.0
  %251 = vmatpush1.msra.mxu0 0.0
  %252 = vmatprep.subr.mxu0 0.0
  %253 = vmatpush1.msra.mxu0 0.0
  %254 = vmatprep.subr.mxu0 0.0
  %255 = vmatpush1.msra.mxu0 0.0
  %256 = vmatprep.subr.mxu0 0.0
  %257 = vmatpush1.msra.mxu0 0.0
  %258 = vmatprep.subr.mxu0 0.0
  %259 = vmatpush1.msra.mxu0 0.0
  %260 = vmatprep.subr.mxu0 0.0
  %261 = vmatpush1.msra.mxu0 0.0
  %262 = vmatprep.subr.mxu0 0.0
  %263 = vmatpush1.msra.mxu0 0.0
  %264 = vmatprep.subr.mxu0 0.0
  %265 = vmatpush1.msra.mxu0 0.0
  %266 = vmatprep.subr.mxu0 0.0
  %267 = vmatpush1.msra.mxu0 0.0
  %268 = vmatprep.subr.mxu0 0.0
  %269 = vmatpush1.msra.mxu0 0.0
  %270 = vmatprep.subr.mxu0 0.0
  %271 = vmatpush1.msra.mxu0 0.0
  %272 = vmatprep.subr.mxu0 0.0
  %273 = vmatpush1.msra.mxu0 0.0
  %274 = vmatprep.subr.mxu0 0.0
  %275 = vmatpush1.msra.mxu0 0.0
  %276 = vmatprep.subr.mxu0 0.0
  %277 = vmatpush1.msra.mxu0 0.0
  %278 = vmatprep.subr.mxu0 0.0
  %279 = vmatpush1.msra.mxu0 0.0
  %280 = vmatprep.subr.mxu0 0.0
  %281 = vmatpush1.msra.mxu0 0.0
  %282 = vmatprep.subr.mxu0 0.0
  %283 = vmatpush1.msra.mxu0 0.0
  %284 = vmatprep.subr.mxu0 0.0
  %285 = vmatpush1.msra.mxu0 0.0
  %286 = vmatprep.subr.mxu0 0.0
  %287 = vmatpush1.msra.mxu0 0.0
  %288 = vmatprep.subr.mxu0 0.0
  %289 = vmatpush1.msra.mxu0 0.0
  %290 = vmatprep.subr.mxu0 0.0
  %291 = vmatpush1.msra.mxu0 0.0
  %292 = vmatprep.subr.mxu0 0.0
  %293 = vmatpush1.msra.mxu0 0.0
  %294 = vmatprep.mubr.f32.mxu0 0.0
  %295 = vmatmul.mubr.f32.gmra.mrb[0].mxu0 %v228
  %v296 = vpop.f32.mrb[0].mxu0
  %v297 = vadd.f32 %v224, %v296
  %v298 = vpop.f32.mrb[0].mxu0
  %299 = vdwg.mxu0
  %v301 = vrot.slane %v297, 7
  %v303 = vsub.f32 %v297, %v301
  %v304 = vmul.f32 %v303, 1.442695
  %v305 = vpow.pop %v304
  %v306 = vadd.f32 %v305, 1.0
  %v307 = vrcp.pop %v306
  %v308 = vsub.f32 1.0, %v307
  %310 = vset.pattern.permute.xlu0 0
  %311 = vperm.xlu0 %310, %v51
  %v312 = vpop.permute.xlu0 %311
  %315 = vset.pattern.permute.xlu0 0
  %316 = vperm.xlu0 %315, %v52
  %v317 = vpop.permute.xlu0 %316
  %320 = vset.pattern.permute.xlu0 0
  %321 = vperm.xlu0 %320, %v53
  %v322 = vpop.permute.xlu0 %321
  %325 = vset.pattern.permute.xlu0 0
  %326 = vperm.xlu0 %325, %v54
  %v327 = vpop.permute.xlu0 %326
  %v329 = vmul.f32 %v312, %v104
  %v330 = vmul.f32 %v317, %v104
  %v331 = vmul.f32 %v322, %v104
  %v332 = vmul.f32 %v327, %v104
  %334 = vset.pattern.permute.xlu0 0
  %335 = vperm.xlu0 %334, %v55
  %v336 = vpop.permute.xlu0 %335
  %339 = vset.pattern.permute.xlu0 0
  %340 = vperm.xlu0 %339, %v56
  %v341 = vpop.permute.xlu0 %340
  %344 = vset.pattern.permute.xlu0 0
  %345 = vperm.xlu0 %344, %v57
  %v346 = vpop.permute.xlu0 %345
  %349 = vset.pattern.permute.xlu0 0
  %350 = vperm.xlu0 %349, %v58
  %v351 = vpop.permute.xlu0 %350
  %v353 = vadd.f32 %v336, %v329
  %v354 = vadd.f32 %v341, %v330
  %v355 = vadd.f32 %v346, %v331
  %v356 = vadd.f32 %v351, %v332
  %357 = vset.pattern.permute.xlu0 1
  %358 = vperm.xlu0 %357, %v51
  %v359 = vpop.permute.xlu0 %358
  %361 = vset.pattern.permute.xlu0 1
  %362 = vperm.xlu0 %361, %v52
  %v363 = vpop.permute.xlu0 %362
  %365 = vset.pattern.permute.xlu0 1
  %366 = vperm.xlu0 %365, %v53
  %v367 = vpop.permute.xlu0 %366
  %369 = vset.pattern.permute.xlu0 1
  %370 = vperm.xlu0 %369, %v54
  %v371 = vpop.permute.xlu0 %370
  %v373 = vmul.f32 %v359, %v152
  %v374 = vmul.f32 %v363, %v152
  %v375 = vmul.f32 %v367, %v152
  %v376 = vmul.f32 %v371, %v152
  %v377 = vadd.f32 %v353, %v373
  %v378 = vadd.f32 %v354, %v374
  %v379 = vadd.f32 %v355, %v375
  %v380 = vadd.f32 %v356, %v376
  %381 = vset.pattern.permute.xlu0 2
  %382 = vperm.xlu0 %381, %v51
  %v383 = vpop.permute.xlu0 %382
  %385 = vset.pattern.permute.xlu0 2
  %386 = vperm.xlu0 %385, %v52
  %v387 = vpop.permute.xlu0 %386
  %389 = vset.pattern.permute.xlu0 2
  %390 = vperm.xlu0 %389, %v53
  %v391 = vpop.permute.xlu0 %390
  %393 = vset.pattern.permute.xlu0 2
  %394 = vperm.xlu0 %393, %v54
  %v395 = vpop.permute.xlu0 %394
  %v397 = vmul.f32 %v383, %v180
  %v398 = vmul.f32 %v387, %v180
  %v399 = vmul.f32 %v391, %v180
  %v400 = vmul.f32 %v395, %v180
  %v401 = vadd.f32 %v377, %v397
  %v402 = vadd.f32 %v378, %v398
  %v403 = vadd.f32 %v379, %v399
  %v404 = vadd.f32 %v380, %v400
  %405 = vset.pattern.permute.xlu0 3
  %406 = vperm.xlu0 %405, %v51
  %v407 = vpop.permute.xlu0 %406
  %409 = vset.pattern.permute.xlu0 3
  %410 = vperm.xlu0 %409, %v52
  %v411 = vpop.permute.xlu0 %410
  %413 = vset.pattern.permute.xlu0 3
  %414 = vperm.xlu0 %413, %v53
  %v415 = vpop.permute.xlu0 %414
  %417 = vset.pattern.permute.xlu0 3
  %418 = vperm.xlu0 %417, %v54
  %v419 = vpop.permute.xlu0 %418
  %v421 = vmul.f32 %v407, %v208
  %v422 = vmul.f32 %v411, %v208
  %v423 = vmul.f32 %v415, %v208
  %v424 = vmul.f32 %v419, %v208
  %v425 = vadd.f32 %v401, %v421
  %v426 = vadd.f32 %v402, %v422
  %v427 = vadd.f32 %v403, %v423
  %v428 = vadd.f32 %v404, %v424
  %429 = vset.pattern.permute.xlu0 4
  %430 = vperm.xlu0 %429, %v51
  %v431 = vpop.permute.xlu0 %430
  %433 = vset.pattern.permute.xlu0 4
  %434 = vperm.xlu0 %433, %v52
  %v435 = vpop.permute.xlu0 %434
  %437 = vset.pattern.permute.xlu0 4
  %438 = vperm.xlu0 %437, %v53
  %v439 = vpop.permute.xlu0 %438
  %441 = vset.pattern.permute.xlu0 4
  %442 = vperm.xlu0 %441, %v54
  %v443 = vpop.permute.xlu0 %442
  %v445 = vadd.f32 %v425, %v431
  %v446 = vadd.f32 %v426, %v435
  %v447 = vadd.f32 %v427, %v439
  %v448 = vadd.f32 %v428, %v443
  %v449 = vmax.f32 %v445, 0.0
  %v450 = vmax.f32 %v446, 0.0
  %v451 = vmax.f32 %v447, 0.0
  %v452 = vmax.f32 %v448, 0.0
  %454 = vset.pattern.permute.xlu0 0
  %455 = vperm.xlu0 %454, %v60
  %v456 = vpop.permute.xlu0 %455
  %v459 = vsel %vm226, %v59, 0
  %461 = vmatprep.subr.mxu0 0.0
  %462 = vmatpush1.msra.mxu0 %v449
  %463 = vmatprep.subr.mxu0 0.0
  %464 = vmatpush1.msra.mxu0 %v450
  %465 = vmatprep.subr.mxu0 0.0
  %466 = vmatpush1.msra.mxu0 %v451
  %467 = vmatprep.subr.mxu0 0.0
  %468 = vmatpush1.msra.mxu0 %v452
  %469 = vmatprep.subr.mxu0 0.0
  %470 = vmatpush1.msra.mxu0 0.0
  %471 = vmatprep.subr.mxu0 0.0
  %472 = vmatpush1.msra.mxu0 0.0
  %473 = vmatprep.subr.mxu0 0.0
  %474 = vmatpush1.msra.mxu0 0.0
  %475 = vmatprep.subr.mxu0 0.0
  %476 = vmatpush1.msra.mxu0 0.0
  %477 = vmatprep.subr.mxu0 0.0
  %478 = vmatpush1.msra.mxu0 0.0
  %479 = vmatprep.subr.mxu0 0.0
  %480 = vmatpush1.msra.mxu0 0.0
  %481 = vmatprep.subr.mxu0 0.0
  %482 = vmatpush1.msra.mxu0 0.0
  %483 = vmatprep.subr.mxu0 0.0
  %484 = vmatpush1.msra.mxu0 0.0
  %485 = vmatprep.subr.mxu0 0.0
  %486 = vmatpush1.msra.mxu0 0.0
  %487 = vmatprep.subr.mxu0 0.0
  %488 = vmatpush1.msra.mxu0 0.0
  %489 = vmatprep.subr.mxu0 0.0
  %490 = vmatpush1.msra.mxu0 0.0
  %491 = vmatprep.subr.mxu0 0.0
  %492 = vmatpush1.msra.mxu0 0.0
  %493 = vmatprep.subr.mxu0 0.0
  %494 = vmatpush1.msra.mxu0 0.0
  %495 = vmatprep.subr.mxu0 0.0
  %496 = vmatpush1.msra.mxu0 0.0
  %497 = vmatprep.subr.mxu0 0.0
  %498 = vmatpush1.msra.mxu0 0.0
  %499 = vmatprep.subr.mxu0 0.0
  %500 = vmatpush1.msra.mxu0 0.0
  %501 = vmatprep.subr.mxu0 0.0
  %502 = vmatpush1.msra.mxu0 0.0
  %503 = vmatprep.subr.mxu0 0.0
  %504 = vmatpush1.msra.mxu0 0.0
  %505 = vmatprep.subr.mxu0 0.0
  %506 = vmatpush1.msra.mxu0 0.0
  %507 = vmatprep.subr.mxu0 0.0
  %508 = vmatpush1.msra.mxu0 0.0
  %509 = vmatprep.subr.mxu0 0.0
  %510 = vmatpush1.msra.mxu0 0.0
  %511 = vmatprep.subr.mxu0 0.0
  %512 = vmatpush1.msra.mxu0 0.0
  %513 = vmatprep.subr.mxu0 0.0
  %514 = vmatpush1.msra.mxu0 0.0
  %515 = vmatprep.subr.mxu0 0.0
  %516 = vmatpush1.msra.mxu0 0.0
  %517 = vmatprep.subr.mxu0 0.0
  %518 = vmatpush1.msra.mxu0 0.0
  %519 = vmatprep.subr.mxu0 0.0
  %520 = vmatpush1.msra.mxu0 0.0
  %521 = vmatprep.subr.mxu0 0.0
  %522 = vmatpush1.msra.mxu0 0.0
  %523 = vmatprep.subr.mxu0 0.0
  %524 = vmatpush1.msra.mxu0 0.0
  %525 = vmatprep.mubr.f32.mxu0 0.0
  %526 = vmatmul.mubr.f32.gmra.mrb[0].mxu0 %v459
  %v527 = vpop.f32.mrb[0].mxu0
  %v528 = vadd.f32 %v456, %v527
  %v529 = vpop.f32.mrb[0].mxu0
  %530 = vdwg.mxu0
  %v532 = vrot.slane %v528, 7
  %v534 = vsub.f32 %v528, %v532
  %v535 = vmul.f32 %v534, 1.442695
  %v536 = vpow.pop %v535
  %v537 = vadd.f32 %v536, 1.0
  %v538 = vrcp.pop %v537
  %v539 = vsub.f32 1.0, %v538
  %540 = vset.pattern.permute.xlu0 5
  %541 = vperm.xlu0 %540, %v51
  %v542 = vpop.permute.xlu0 %541
  %544 = vset.pattern.permute.xlu0 5
  %545 = vperm.xlu0 %544, %v52
  %v546 = vpop.permute.xlu0 %545
  %548 = vset.pattern.permute.xlu0 5
  %549 = vperm.xlu0 %548, %v53
  %v550 = vpop.permute.xlu0 %549
  %552 = vset.pattern.permute.xlu0 5
  %553 = vperm.xlu0 %552, %v54
  %v554 = vpop.permute.xlu0 %553
  %v556 = vadd.f32 %v425, %v542
  %v557 = vadd.f32 %v426, %v546
  %v558 = vadd.f32 %v427, %v550
  %v559 = vadd.f32 %v428, %v554
  %v560 = vmax.f32 %v556, 0.0
  %v561 = vmax.f32 %v557, 0.0
  %v562 = vmax.f32 %v558, 0.0
  %v563 = vmax.f32 %v559, 0.0
  %564 = vmatprep.subr.mxu0 0.0
  %565 = vmatpush1.msra.mxu0 %v560
  %566 = vmatprep.subr.mxu0 0.0
  %567 = vmatpush1.msra.mxu0 %v561
  %568 = vmatprep.subr.mxu0 0.0
  %569 = vmatpush1.msra.mxu0 %v562
  %570 = vmatprep.subr.mxu0 0.0
  %571 = vmatpush1.msra.mxu0 %v563
  %572 = vmatprep.subr.mxu0 0.0
  %573 = vmatpush1.msra.mxu0 0.0
  %574 = vmatprep.subr.mxu0 0.0
  %575 = vmatpush1.msra.mxu0 0.0
  %576 = vmatprep.subr.mxu0 0.0
  %577 = vmatpush1.msra.mxu0 0.0
  %578 = vmatprep.subr.mxu0 0.0
  %579 = vmatpush1.msra.mxu0 0.0
  %580 = vmatprep.subr.mxu0 0.0
  %581 = vmatpush1.msra.mxu0 0.0
  %582 = vmatprep.subr.mxu0 0.0
  %583 = vmatpush1.msra.mxu0 0.0
  %584 = vmatprep.subr.mxu0 0.0
  %585 = vmatpush1.msra.mxu0 0.0
  %586 = vmatprep.subr.mxu0 0.0
  %587 = vmatpush1.msra.mxu0 0.0
  %588 = vmatprep.subr.mxu0 0.0
  %589 = vmatpush1.msra.mxu0 0.0
  %590 = vmatprep.subr.mxu0 0.0
  %591 = vmatpush1.msra.mxu0 0.0
  %592 = vmatprep.subr.mxu0 0.0
  %593 = vmatpush1.msra.mxu0 0.0
  %594 = vmatprep.subr.mxu0 0.0
  %595 = vmatpush1.msra.mxu0 0.0
  %596 = vmatprep.subr.mxu0 0.0
  %597 = vmatpush1.msra.mxu0 0.0
  %598 = vmatprep.subr.mxu0 0.0
  %599 = vmatpush1.msra.mxu0 0.0
  %600 = vmatprep.subr.mxu0 0.0
  %601 = vmatpush1.msra.mxu0 0.0
  %602 = vmatprep.subr.mxu0 0.0
  %603 = vmatpush1.msra.mxu0 0.0
  %604 = vmatprep.subr.mxu0 0.0
  %605 = vmatpush1.msra.mxu0 0.0
  %606 = vmatprep.subr.mxu0 0.0
  %607 = vmatpush1.msra.mxu0 0.0
  %608 = vmatprep.subr.mxu0 0.0
  %609 = vmatpush1.msra.mxu0 0.0
  %610 = vmatprep.subr.mxu0 0.0
  %611 = vmatpush1.msra.mxu0 0.0
  %612 = vmatprep.subr.mxu0 0.0
  %613 = vmatpush1.msra.mxu0 0.0
  %614 = vmatprep.subr.mxu0 0.0
  %615 = vmatpush1.msra.mxu0 0.0
  %616 = vmatprep.subr.mxu0 0.0
  %617 = vmatpush1.msra.mxu0 0.0
  %618 = vmatprep.subr.mxu0 0.0
  %619 = vmatpush1.msra.mxu0 0.0
  %620 = vmatprep.subr.mxu0 0.0
  %621 = vmatpush1.msra.mxu0 0.0
  %622 = vmatprep.subr.mxu0 0.0
  %623 = vmatpush1.msra.mxu0 0.0
  %624 = vmatprep.subr.mxu0 0.0
  %625 = vmatpush1.msra.mxu0 0.0
  %626 = vmatprep.subr.mxu0 0.0
  %627 = vmatpush1.msra.mxu0 0.0
  %628 = vmatprep.mubr.f32.mxu0 0.0
  %629 = vmatmul.mubr.f32.gmra.mrb[0].mxu0 %v459
  %v630 = vpop.f32.mrb[0].mxu0
  %v631 = vadd.f32 %v456, %v630
  %v632 = vpop.f32.mrb[0].mxu0
  %633 = vdwg.mxu0
  %v635 = vrot.slane %v631, 7
  %v637 = vsub.f32 %v631, %v635
  %v638 = vmul.f32 %v637, 1.442695
  %v639 = vpow.pop %v638
  %v640 = vadd.f32 %v639, 1.0
  %v641 = vrcp.pop %v640
  %v642 = vsub.f32 1.0, %v641
  %644 = vset.pattern.permute.xlu0 0
  %645 = vperm.xlu0 %644, %v71
  %v646 = vpop.permute.xlu0 %645
  %649 = vset.pattern.permute.xlu0 0
  %650 = vperm.xlu0 %649, %v72
  %v651 = vpop.permute.xlu0 %650
  %654 = vset.pattern.permute.xlu0 0
  %655 = vperm.xlu0 %654, %v73
  %v656 = vpop.permute.xlu0 %655
  %659 = vset.pattern.permute.xlu0 0
  %660 = vperm.xlu0 %659, %v74
  %v661 = vpop.permute.xlu0 %660
  %v663 = vmul.f32 %v646, %v104
  %v664 = vmul.f32 %v651, %v104
  %v665 = vmul.f32 %v656, %v104
  %v666 = vmul.f32 %v661, %v104
  %668 = vset.pattern.permute.xlu0 0
  %669 = vperm.xlu0 %668, %v75
  %v670 = vpop.permute.xlu0 %669
  %673 = vset.pattern.permute.xlu0 0
  %674 = vperm.xlu0 %673, %v76
  %v675 = vpop.permute.xlu0 %674
  %678 = vset.pattern.permute.xlu0 0
  %679 = vperm.xlu0 %678, %v77
  %v680 = vpop.permute.xlu0 %679
  %683 = vset.pattern.permute.xlu0 0
  %684 = vperm.xlu0 %683, %v78
  %v685 = vpop.permute.xlu0 %684
  %v687 = vadd.f32 %v670, %v663
  %v688 = vadd.f32 %v675, %v664
  %v689 = vadd.f32 %v680, %v665
  %v690 = vadd.f32 %v685, %v666
  %691 = vset.pattern.permute.xlu0 1
  %692 = vperm.xlu0 %691, %v71
  %v693 = vpop.permute.xlu0 %692
  %695 = vset.pattern.permute.xlu0 1
  %696 = vperm.xlu0 %695, %v72
  %v697 = vpop.permute.xlu0 %696
  %699 = vset.pattern.permute.xlu0 1
  %700 = vperm.xlu0 %699, %v73
  %v701 = vpop.permute.xlu0 %700
  %703 = vset.pattern.permute.xlu0 1
  %704 = vperm.xlu0 %703, %v74
  %v705 = vpop.permute.xlu0 %704
  %v707 = vmul.f32 %v693, %v152
  %v708 = vmul.f32 %v697, %v152
  %v709 = vmul.f32 %v701, %v152
  %v710 = vmul.f32 %v705, %v152
  %v711 = vadd.f32 %v687, %v707
  %v712 = vadd.f32 %v688, %v708
  %v713 = vadd.f32 %v689, %v709
  %v714 = vadd.f32 %v690, %v710
  %715 = vset.pattern.permute.xlu0 2
  %716 = vperm.xlu0 %715, %v71
  %v717 = vpop.permute.xlu0 %716
  %719 = vset.pattern.permute.xlu0 2
  %720 = vperm.xlu0 %719, %v72
  %v721 = vpop.permute.xlu0 %720
  %723 = vset.pattern.permute.xlu0 2
  %724 = vperm.xlu0 %723, %v73
  %v725 = vpop.permute.xlu0 %724
  %727 = vset.pattern.permute.xlu0 2
  %728 = vperm.xlu0 %727, %v74
  %v729 = vpop.permute.xlu0 %728
  %v731 = vmul.f32 %v717, %v180
  %v732 = vmul.f32 %v721, %v180
  %v733 = vmul.f32 %v725, %v180
  %v734 = vmul.f32 %v729, %v180
  %v735 = vadd.f32 %v711, %v731
  %v736 = vadd.f32 %v712, %v732
  %v737 = vadd.f32 %v713, %v733
  %v738 = vadd.f32 %v714, %v734
  %739 = vset.pattern.permute.xlu0 3
  %740 = vperm.xlu0 %739, %v71
  %v741 = vpop.permute.xlu0 %740
  %743 = vset.pattern.permute.xlu0 3
  %744 = vperm.xlu0 %743, %v72
  %v745 = vpop.permute.xlu0 %744
  %747 = vset.pattern.permute.xlu0 3
  %748 = vperm.xlu0 %747, %v73
  %v749 = vpop.permute.xlu0 %748
  %751 = vset.pattern.permute.xlu0 3
  %752 = vperm.xlu0 %751, %v74
  %v753 = vpop.permute.xlu0 %752
  %v755 = vmul.f32 %v741, %v208
  %v756 = vmul.f32 %v745, %v208
  %v757 = vmul.f32 %v749, %v208
  %v758 = vmul.f32 %v753, %v208
  %v759 = vadd.f32 %v735, %v755
  %v760 = vadd.f32 %v736, %v756
  %v761 = vadd.f32 %v737, %v757
  %v762 = vadd.f32 %v738, %v758
  %763 = vset.pattern.permute.xlu0 10
  %764 = vperm.xlu0 %763, %v71
  %v765 = vpop.permute.xlu0 %764
  %767 = vset.pattern.permute.xlu0 10
  %768 = vperm.xlu0 %767, %v72
  %v769 = vpop.permute.xlu0 %768
  %771 = vset.pattern.permute.xlu0 10
  %772 = vperm.xlu0 %771, %v73
  %v773 = vpop.permute.xlu0 %772
  %775 = vset.pattern.permute.xlu0 10
  %776 = vperm.xlu0 %775, %v74
  %v777 = vpop.permute.xlu0 %776
  %v779 = vlaneseq
  %v780 = vshrl.u32 %v779, 7
  %v781 = vsub.s32 1, %v780
  %v782 = vrot.slane %v307, %v781
  %v783 = vmul.f32 %v765, %v782
  %v784 = vmul.f32 %v769, %v782
  %v785 = vmul.f32 %v773, %v782
  %v786 = vmul.f32 %v777, %v782
  %v787 = vadd.f32 %v759, %v783
  %v788 = vadd.f32 %v760, %v784
  %v789 = vadd.f32 %v761, %v785
  %v790 = vadd.f32 %v762, %v786
  %791 = vset.pattern.permute.xlu0 11
  %792 = vperm.xlu0 %791, %v71
  %v793 = vpop.permute.xlu0 %792
  %795 = vset.pattern.permute.xlu0 11
  %796 = vperm.xlu0 %795, %v72
  %v797 = vpop.permute.xlu0 %796
  %799 = vset.pattern.permute.xlu0 11
  %800 = vperm.xlu0 %799, %v73
  %v801 = vpop.permute.xlu0 %800
  %803 = vset.pattern.permute.xlu0 11
  %804 = vperm.xlu0 %803, %v74
  %v805 = vpop.permute.xlu0 %804
  %v807 = vlaneseq
  %v808 = vshrl.u32 %v807, 7
  %v809 = vsub.s32 1, %v808
  %v810 = vrot.slane %v308, %v809
  %v811 = vmul.f32 %v793, %v810
  %v812 = vmul.f32 %v797, %v810
  %v813 = vmul.f32 %v801, %v810
  %v814 = vmul.f32 %v805, %v810
  %v815 = vadd.f32 %v787, %v811
  %v816 = vadd.f32 %v788, %v812
  %v817 = vadd.f32 %v789, %v813
  %v818 = vadd.f32 %v790, %v814
  %819 = vset.pattern.permute.xlu0 4
  %820 = vperm.xlu0 %819, %v71
  %v821 = vpop.permute.xlu0 %820
  %823 = vset.pattern.permute.xlu0 4
  %824 = vperm.xlu0 %823, %v72
  %v825 = vpop.permute.xlu0 %824
  %827 = vset.pattern.permute.xlu0 4
  %828 = vperm.xlu0 %827, %v73
  %v829 = vpop.permute.xlu0 %828
  %831 = vset.pattern.permute.xlu0 4
  %832 = vperm.xlu0 %831, %v74
  %v833 = vpop.permute.xlu0 %832
  %v835 = vadd.f32 %v815, %v821
  %v836 = vadd.f32 %v816, %v825
  %v837 = vadd.f32 %v817, %v829
  %v838 = vadd.f32 %v818, %v833
  %839 = vset.pattern.permute.xlu0 6
  %840 = vperm.xlu0 %839, %v71
  %v841 = vpop.permute.xlu0 %840
  %843 = vset.pattern.permute.xlu0 6
  %844 = vperm.xlu0 %843, %v72
  %v845 = vpop.permute.xlu0 %844
  %847 = vset.pattern.permute.xlu0 6
  %848 = vperm.xlu0 %847, %v73
  %v849 = vpop.permute.xlu0 %848
  %851 = vset.pattern.permute.xlu0 6
  %852 = vperm.xlu0 %851, %v74
  %v853 = vpop.permute.xlu0 %852
  %v855 = vlaneseq
  %v856 = vshrl.u32 %v855, 7
  %v857 = vsub.s32 1, %v856
  %v858 = vrot.slane %v538, %v857
  %v859 = vmul.f32 %v841, %v858
  %v860 = vmul.f32 %v845, %v858
  %v861 = vmul.f32 %v849, %v858
  %v862 = vmul.f32 %v853, %v858
  %v863 = vadd.f32 %v835, %v859
  %v864 = vadd.f32 %v836, %v860
  %v865 = vadd.f32 %v837, %v861
  %v866 = vadd.f32 %v838, %v862
  %867 = vset.pattern.permute.xlu0 7
  %868 = vperm.xlu0 %867, %v71
  %v869 = vpop.permute.xlu0 %868
  %871 = vset.pattern.permute.xlu0 7
  %872 = vperm.xlu0 %871, %v72
  %v873 = vpop.permute.xlu0 %872
  %875 = vset.pattern.permute.xlu0 7
  %876 = vperm.xlu0 %875, %v73
  %v877 = vpop.permute.xlu0 %876
  %879 = vset.pattern.permute.xlu0 7
  %880 = vperm.xlu0 %879, %v74
  %v881 = vpop.permute.xlu0 %880
  %v883 = vlaneseq
  %v884 = vshrl.u32 %v883, 7
  %v885 = vsub.s32 1, %v884
  %v886 = vrot.slane %v539, %v885
  %v887 = vmul.f32 %v869, %v886
  %v888 = vmul.f32 %v873, %v886
  %v889 = vmul.f32 %v877, %v886
  %v890 = vmul.f32 %v881, %v886
  %v891 = vadd.f32 %v863, %v887
  %v892 = vadd.f32 %v864, %v888
  %v893 = vadd.f32 %v865, %v889
  %v894 = vadd.f32 %v866, %v890
  %v895 = vmul.f32 %v538, 0.5
  %896 = vrot.lane.b32.xlu0 %v71, 124
  %v897 = vpop.permute.xlu0 %896
  %898 = vrot.lane.b32.xlu0 %v72, 124
  %v899 = vpop.permute.xlu0 %898
  %900 = vrot.lane.b32.xlu0 %v73, 124
  %v901 = vpop.permute.xlu0 %900
  %902 = vrot.lane.b32.xlu0 %v74, 124
  %v903 = vpop.permute.xlu0 %902
  %v908 = vadd.f32 %v71, %v897
  %v909 = vadd.f32 %v72, %v899
  %v910 = vadd.f32 %v73, %v901
  %v911 = vadd.f32 %v74, %v903
  %913 = vset.pattern.permute.xlu0 8
  %914 = vperm.xlu0 %913, %v908
  %v915 = vpop.permute.xlu0 %914
  %918 = vset.pattern.permute.xlu0 8
  %919 = vperm.xlu0 %918, %v909
  %v920 = vpop.permute.xlu0 %919
  %923 = vset.pattern.permute.xlu0 8
  %924 = vperm.xlu0 %923, %v910
  %v925 = vpop.permute.xlu0 %924
  %928 = vset.pattern.permute.xlu0 8
  %929 = vperm.xlu0 %928, %v911
  %v930 = vpop.permute.xlu0 %929
  %v932 = vadd.f32 %v891, %v915
  %v933 = vadd.f32 %v892, %v920
  %v934 = vadd.f32 %v893, %v925
  %v935 = vadd.f32 %v894, %v930
  %v936 = vmax.f32 %v932, 0.0
  %v937 = vmax.f32 %v933, 0.0
  %v938 = vmax.f32 %v934, 0.0
  %v939 = vmax.f32 %v935, 0.0
  %v940 = vmul.f32 %v895, %v307
  %v941 = vlaneseq
  %v942 = vshrl.u32 %v941, 7
  %v943 = vsub.s32 1, %v942
  %v944 = vrot.slane %v940, %v943
  %v945 = vmul.f32 %v936, %v944
  %v946 = vmul.f32 %v937, %v944
  %v947 = vmul.f32 %v938, %v944
  %v948 = vmul.f32 %v939, %v944
  %v949 = vadd.f32 %v945, 0.0
  %v950 = vadd.f32 %v946, 0.0
  %v951 = vadd.f32 %v947, 0.0
  %v952 = vadd.f32 %v948, 0.0
  %953 = vrot.lane.b32.xlu0 %v71, 123
  %v954 = vpop.permute.xlu0 %953
  %955 = vrot.lane.b32.xlu0 %v72, 123
  %v956 = vpop.permute.xlu0 %955
  %957 = vrot.lane.b32.xlu0 %v73, 123
  %v958 = vpop.permute.xlu0 %957
  %959 = vrot.lane.b32.xlu0 %v74, 123
  %v960 = vpop.permute.xlu0 %959
  %v965 = vadd.f32 %v71, %v954
  %v966 = vadd.f32 %v72, %v956
  %v967 = vadd.f32 %v73, %v958
  %v968 = vadd.f32 %v74, %v960
  %970 = vset.pattern.permute.xlu0 8
  %971 = vperm.xlu0 %970, %v965
  %v972 = vpop.permute.xlu0 %971
  %975 = vset.pattern.permute.xlu0 8
  %976 = vperm.xlu0 %975, %v966
  %v977 = vpop.permute.xlu0 %976
  %980 = vset.pattern.permute.xlu0 8
  %981 = vperm.xlu0 %980, %v967
  %v982 = vpop.permute.xlu0 %981
  %985 = vset.pattern.permute.xlu0 8
  %986 = vperm.xlu0 %985, %v968
  %v987 = vpop.permute.xlu0 %986
  %v989 = vadd.f32 %v891, %v972
  %v990 = vadd.f32 %v892, %v977
  %v991 = vadd.f32 %v893, %v982
  %v992 = vadd.f32 %v894, %v987
  %v993 = vmax.f32 %v989, 0.0
  %v994 = vmax.f32 %v990, 0.0
  %v995 = vmax.f32 %v991, 0.0
  %v996 = vmax.f32 %v992, 0.0
  %v997 = vmul.f32 %v895, %v308
  %v998 = vlaneseq
  %v999 = vshrl.u32 %v998, 7
  %v1000 = vsub.s32 1, %v999
  %v1001 = vrot.slane %v997, %v1000
  %v1002 = vmul.f32 %v993, %v1001
  %v1003 = vmul.f32 %v994, %v1001
  %v1004 = vmul.f32 %v995, %v1001
  %v1005 = vmul.f32 %v996, %v1001
  %v1006 = vadd.f32 %v949, %v1002
  %v1007 = vadd.f32 %v950, %v1003
  %v1008 = vadd.f32 %v951, %v1004
  %v1009 = vadd.f32 %v952, %v1005
  %v1010 = vmul.f32 %v539, 0.5
  %1011 = vrot.lane.b32.xlu0 %v71, 125
  %v1012 = vpop.permute.xlu0 %1011
  %1013 = vrot.lane.b32.xlu0 %v72, 125
  %v1014 = vpop.permute.xlu0 %1013
  %1015 = vrot.lane.b32.xlu0 %v73, 125
  %v1016 = vpop.permute.xlu0 %1015
  %1017 = vrot.lane.b32.xlu0 %v74, 125
  %v1018 = vpop.permute.xlu0 %1017
  %v1023 = vadd.f32 %v71, %v1012
  %v1024 = vadd.f32 %v72, %v1014
  %v1025 = vadd.f32 %v73, %v1016
  %v1026 = vadd.f32 %v74, %v1018
  %1028 = vset.pattern.permute.xlu0 9
  %1029 = vperm.xlu0 %1028, %v1023
  %v1030 = vpop.permute.xlu0 %1029
  %1033 = vset.pattern.permute.xlu0 9
  %1034 = vperm.xlu0 %1033, %v1024
  %v1035 = vpop.permute.xlu0 %1034
  %1038 = vset.pattern.permute.xlu0 9
  %1039 = vperm.xlu0 %1038, %v1025
  %v1040 = vpop.permute.xlu0 %1039
  %1043 = vset.pattern.permute.xlu0 9
  %1044 = vperm.xlu0 %1043, %v1026
  %v1045 = vpop.permute.xlu0 %1044
  %v1047 = vadd.f32 %v891, %v1030
  %v1048 = vadd.f32 %v892, %v1035
  %v1049 = vadd.f32 %v893, %v1040
  %v1050 = vadd.f32 %v894, %v1045
  %v1051 = vmax.f32 %v1047, 0.0
  %v1052 = vmax.f32 %v1048, 0.0
  %v1053 = vmax.f32 %v1049, 0.0
  %v1054 = vmax.f32 %v1050, 0.0
  %v1055 = vmul.f32 %v1010, %v307
  %v1056 = vlaneseq
  %v1057 = vshrl.u32 %v1056, 7
  %v1058 = vsub.s32 1, %v1057
  %v1059 = vrot.slane %v1055, %v1058
  %v1060 = vmul.f32 %v1051, %v1059
  %v1061 = vmul.f32 %v1052, %v1059
  %v1062 = vmul.f32 %v1053, %v1059
  %v1063 = vmul.f32 %v1054, %v1059
  %v1064 = vadd.f32 %v1006, %v1060
  %v1065 = vadd.f32 %v1007, %v1061
  %v1066 = vadd.f32 %v1008, %v1062
  %v1067 = vadd.f32 %v1009, %v1063
  %1068 = vset.pattern.permute.xlu0 9
  %1069 = vperm.xlu0 %1068, %v908
  %v1070 = vpop.permute.xlu0 %1069
  %1072 = vset.pattern.permute.xlu0 9
  %1073 = vperm.xlu0 %1072, %v909
  %v1074 = vpop.permute.xlu0 %1073
  %1076 = vset.pattern.permute.xlu0 9
  %1077 = vperm.xlu0 %1076, %v910
  %v1078 = vpop.permute.xlu0 %1077
  %1080 = vset.pattern.permute.xlu0 9
  %1081 = vperm.xlu0 %1080, %v911
  %v1082 = vpop.permute.xlu0 %1081
  %v1084 = vadd.f32 %v891, %v1070
  %v1085 = vadd.f32 %v892, %v1074
  %v1086 = vadd.f32 %v893, %v1078
  %v1087 = vadd.f32 %v894, %v1082
  %v1088 = vmax.f32 %v1084, 0.0
  %v1089 = vmax.f32 %v1085, 0.0
  %v1090 = vmax.f32 %v1086, 0.0
  %v1091 = vmax.f32 %v1087, 0.0
  %v1092 = vmul.f32 %v1010, %v308
  %v1093 = vlaneseq
  %v1094 = vshrl.u32 %v1093, 7
  %v1095 = vsub.s32 1, %v1094
  %v1096 = vrot.slane %v1092, %v1095
  %v1097 = vmul.f32 %v1088, %v1096
  %v1098 = vmul.f32 %v1089, %v1096
  %v1099 = vmul.f32 %v1090, %v1096
  %v1100 = vmul.f32 %v1091, %v1096
  %v1101 = vadd.f32 %v1064, %v1097
  %v1102 = vadd.f32 %v1065, %v1098
  %v1103 = vadd.f32 %v1066, %v1099
  %v1104 = vadd.f32 %v1067, %v1100
  %1105 = vset.pattern.permute.xlu0 5
  %1106 = vperm.xlu0 %1105, %v71
  %v1107 = vpop.permute.xlu0 %1106
  %1109 = vset.pattern.permute.xlu0 5
  %1110 = vperm.xlu0 %1109, %v72
  %v1111 = vpop.permute.xlu0 %1110
  %1113 = vset.pattern.permute.xlu0 5
  %1114 = vperm.xlu0 %1113, %v73
  %v1115 = vpop.permute.xlu0 %1114
  %1117 = vset.pattern.permute.xlu0 5
  %1118 = vperm.xlu0 %1117, %v74
  %v1119 = vpop.permute.xlu0 %1118
  %v1121 = vadd.f32 %v815, %v1107
  %v1122 = vadd.f32 %v816, %v1111
  %v1123 = vadd.f32 %v817, %v1115
  %v1124 = vadd.f32 %v818, %v1119
  %v1125 = vlaneseq
  %v1126 = vshrl.u32 %v1125, 7
  %v1127 = vsub.s32 1, %v1126
  %v1128 = vrot.slane %v641, %v1127
  %v1129 = vmul.f32 %v841, %v1128
  %v1130 = vmul.f32 %v845, %v1128
  %v1131 = vmul.f32 %v849, %v1128
  %v1132 = vmul.f32 %v853, %v1128
  %v1133 = vadd.f32 %v1121, %v1129
  %v1134 = vadd.f32 %v1122, %v1130
  %v1135 = vadd.f32 %v1123, %v1131
  %v1136 = vadd.f32 %v1124, %v1132
  %v1137 = vlaneseq
  %v1138 = vshrl.u32 %v1137, 7
  %v1139 = vsub.s32 1, %v1138
  %v1140 = vrot.slane %v642, %v1139
  %v1141 = vmul.f32 %v869, %v1140
  %v1142 = vmul.f32 %v873, %v1140
  %v1143 = vmul.f32 %v877, %v1140
  %v1144 = vmul.f32 %v881, %v1140
  %v1145 = vadd.f32 %v1133, %v1141
  %v1146 = vadd.f32 %v1134, %v1142
  %v1147 = vadd.f32 %v1135, %v1143
  %v1148 = vadd.f32 %v1136, %v1144
  %v1149 = vmul.f32 %v641, 0.5
  %v1150 = vadd.f32 %v1145, %v915
  %v1151 = vadd.f32 %v1146, %v920
  %v1152 = vadd.f32 %v1147, %v925
  %v1153 = vadd.f32 %v1148, %v930
  %v1154 = vmax.f32 %v1150, 0.0
  %v1155 = vmax.f32 %v1151, 0.0
  %v1156 = vmax.f32 %v1152, 0.0
  %v1157 = vmax.f32 %v1153, 0.0
  %v1158 = vmul.f32 %v1149, %v307
  %v1159 = vlaneseq
  %v1160 = vshrl.u32 %v1159, 7
  %v1161 = vsub.s32 1, %v1160
  %v1162 = vrot.slane %v1158, %v1161
  %v1163 = vmul.f32 %v1154, %v1162
  %v1164 = vmul.f32 %v1155, %v1162
  %v1165 = vmul.f32 %v1156, %v1162
  %v1166 = vmul.f32 %v1157, %v1162
  %v1167 = vadd.f32 %v1101, %v1163
  %v1168 = vadd.f32 %v1102, %v1164
  %v1169 = vadd.f32 %v1103, %v1165
  %v1170 = vadd.f32 %v1104, %v1166
  %v1171 = vadd.f32 %v1145, %v972
  %v1172 = vadd.f32 %v1146, %v977
  %v1173 = vadd.f32 %v1147, %v982
  %v1174 = vadd.f32 %v1148, %v987
  %v1175 = vmax.f32 %v1171, 0.0
  %v1176 = vmax.f32 %v1172, 0.0
  %v1177 = vmax.f32 %v1173, 0.0
  %v1178 = vmax.f32 %v1174, 0.0
  %v1179 = vmul.f32 %v1149, %v308
  %v1180 = vlaneseq
  %v1181 = vshrl.u32 %v1180, 7
  %v1182 = vsub.s32 1, %v1181
  %v1183 = vrot.slane %v1179, %v1182
  %v1184 = vmul.f32 %v1175, %v1183
  %v1185 = vmul.f32 %v1176, %v1183
  %v1186 = vmul.f32 %v1177, %v1183
  %v1187 = vmul.f32 %v1178, %v1183
  %v1188 = vadd.f32 %v1167, %v1184
  %v1189 = vadd.f32 %v1168, %v1185
  %v1190 = vadd.f32 %v1169, %v1186
  %v1191 = vadd.f32 %v1170, %v1187
  %v1192 = vmul.f32 %v642, 0.5
  %v1193 = vadd.f32 %v1145, %v1030
  %v1194 = vadd.f32 %v1146, %v1035
  %v1195 = vadd.f32 %v1147, %v1040
  %v1196 = vadd.f32 %v1148, %v1045
  %v1197 = vmax.f32 %v1193, 0.0
  %v1198 = vmax.f32 %v1194, 0.0
  %v1199 = vmax.f32 %v1195, 0.0
  %v1200 = vmax.f32 %v1196, 0.0
  %v1201 = vmul.f32 %v1192, %v307
  %v1202 = vlaneseq
  %v1203 = vshrl.u32 %v1202, 7
  %v1204 = vsub.s32 1, %v1203
  %v1205 = vrot.slane %v1201, %v1204
  %v1206 = vmul.f32 %v1197, %v1205
  %v1207 = vmul.f32 %v1198, %v1205
  %v1208 = vmul.f32 %v1199, %v1205
  %v1209 = vmul.f32 %v1200, %v1205
  %v1210 = vadd.f32 %v1188, %v1206
  %v1211 = vadd.f32 %v1189, %v1207
  %v1212 = vadd.f32 %v1190, %v1208
  %v1213 = vadd.f32 %v1191, %v1209
  %v1214 = vadd.f32 %v1145, %v1070
  %v1215 = vadd.f32 %v1146, %v1074
  %v1216 = vadd.f32 %v1147, %v1078
  %v1217 = vadd.f32 %v1148, %v1082
  %v1218 = vmax.f32 %v1214, 0.0
  %v1219 = vmax.f32 %v1215, 0.0
  %v1220 = vmax.f32 %v1216, 0.0
  %v1221 = vmax.f32 %v1217, 0.0
  %v1222 = vmul.f32 %v1192, %v308
  %v1223 = vlaneseq
  %v1224 = vshrl.u32 %v1223, 7
  %v1225 = vsub.s32 1, %v1224
  %v1226 = vrot.slane %v1222, %v1225
  %v1227 = vmul.f32 %v1218, %v1226
  %v1228 = vmul.f32 %v1219, %v1226
  %v1229 = vmul.f32 %v1220, %v1226
  %v1230 = vmul.f32 %v1221, %v1226
  %v1231 = vadd.f32 %v1210, %v1227
  %v1232 = vadd.f32 %v1211, %v1228
  %v1233 = vadd.f32 %v1212, %v1229
  %v1234 = vadd.f32 %v1213, %v1230
  %1236 = vset.pattern.permute.xlu0 0
  %1237 = vperm.xlu0 %1236, %v80
  %v1238 = vpop.permute.xlu0 %1237
  %v1240 = vlaneseq
  %v1241 = vshrl.u32 %v1240, 7
  %v1242 = vsub.s32 0, %v1241
  %v1243 = vrot.slane %v1238, %v1242
  %v1245 = vsel %vm226, %v79, 0
  %1247 = vmatprep.subr.mxu0 0.0
  %1248 = vmatpush1.msra.mxu0 %v1231
  %1249 = vmatprep.subr.mxu0 0.0
  %1250 = vmatpush1.msra.mxu0 %v1232
  %1251 = vmatprep.subr.mxu0 0.0
  %1252 = vmatpush1.msra.mxu0 %v1233
  %1253 = vmatprep.subr.mxu0 0.0
  %1254 = vmatpush1.msra.mxu0 %v1234
  %1255 = vmatprep.subr.mxu0 0.0
  %1256 = vmatpush1.msra.mxu0 0.0
  %1257 = vmatprep.subr.mxu0 0.0
  %1258 = vmatpush1.msra.mxu0 0.0
  %1259 = vmatprep.subr.mxu0 0.0
  %1260 = vmatpush1.msra.mxu0 0.0
  %1261 = vmatprep.subr.mxu0 0.0
  %1262 = vmatpush1.msra.mxu0 0.0
  %1263 = vmatprep.subr.mxu0 0.0
  %1264 = vmatpush1.msra.mxu0 0.0
  %1265 = vmatprep.subr.mxu0 0.0
  %1266 = vmatpush1.msra.mxu0 0.0
  %1267 = vmatprep.subr.mxu0 0.0
  %1268 = vmatpush1.msra.mxu0 0.0
  %1269 = vmatprep.subr.mxu0 0.0
  %1270 = vmatpush1.msra.mxu0 0.0
  %1271 = vmatprep.subr.mxu0 0.0
  %1272 = vmatpush1.msra.mxu0 0.0
  %1273 = vmatprep.subr.mxu0 0.0
  %1274 = vmatpush1.msra.mxu0 0.0
  %1275 = vmatprep.subr.mxu0 0.0
  %1276 = vmatpush1.msra.mxu0 0.0
  %1277 = vmatprep.subr.mxu0 0.0
  %1278 = vmatpush1.msra.mxu0 0.0
  %1279 = vmatprep.subr.mxu0 0.0
  %1280 = vmatpush1.msra.mxu0 0.0
  %1281 = vmatprep.subr.mxu0 0.0
  %1282 = vmatpush1.msra.mxu0 0.0
  %1283 = vmatprep.subr.mxu0 0.0
  %1284 = vmatpush1.msra.mxu0 0.0
  %1285 = vmatprep.subr.mxu0 0.0
  %1286 = vmatpush1.msra.mxu0 0.0
  %1287 = vmatprep.subr.mxu0 0.0
  %1288 = vmatpush1.msra.mxu0 0.0
  %1289 = vmatprep.subr.mxu0 0.0
  %1290 = vmatpush1.msra.mxu0 0.0
  %1291 = vmatprep.subr.mxu0 0.0
  %1292 = vmatpush1.msra.mxu0 0.0
  %1293 = vmatprep.subr.mxu0 0.0
  %1294 = vmatpush1.msra.mxu0 0.0
  %1295 = vmatprep.subr.mxu0 0.0
  %1296 = vmatpush1.msra.mxu0 0.0
  %1297 = vmatprep.subr.mxu0 0.0
  %1298 = vmatpush1.msra.mxu0 0.0
  %1299 = vmatprep.subr.mxu0 0.0
  %1300 = vmatpush1.msra.mxu0 0.0
  %1301 = vmatprep.subr.mxu0 0.0
  %1302 = vmatpush1.msra.mxu0 0.0
  %1303 = vmatprep.subr.mxu0 0.0
  %1304 = vmatpush1.msra.mxu0 0.0
  %1305 = vmatprep.subr.mxu0 0.0
  %1306 = vmatpush1.msra.mxu0 0.0
  %1307 = vmatprep.subr.mxu0 0.0
  %1308 = vmatpush1.msra.mxu0 0.0
  %1309 = vmatprep.subr.mxu0 0.0
  %1310 = vmatpush1.msra.mxu0 0.0
  %1311 = vmatprep.mubr.f32.mxu0 0.0
  %1312 = vmatmul.mubr.f32.gmra.mrb[0].mxu0 %v1245
  %v1313 = vpop.f32.mrb[0].mxu0
  %v1314 = vadd.f32 %v1243, %v1313
  %v1315 = vpop.f32.mrb[0].mxu0
  %1316 = vdwg.mxu0
  %1317 = vst [vmem:[%s14] sm:$0x1] %v1314
  // Predicated region
  $region58: #{model_forward.1} parent=0 // pred_check
    _
  $region59: #{model_forward.1} parent=0 // pred_check_branch
    %1319 = sbr.rel (0) target = $region61
  $region60: #{model_forward.1} parent=0 // pred_region
    _
  $region61: #{model_forward.1} parent=0 // pred_fallthru
    _
  // Predicated region
  $region62: #{model_forward.1} parent=0 // pred_check
    _
  $region63: #{model_forward.1} parent=0 // pred_check_branch
    %1321 = sbr.rel (0) target = $region65
  $region64: #{model_forward.1} parent=0 // pred_region
    _
  $region65: #{model_forward.1} parent=0 // pred_fallthru
    _

</llo_original>
